<compile_context>
chip_gen: v7x
topology: tpu7x:2x2x1
jax: 0.10.0
libtpu: 0.0.40
codegen_flags: <defaults>
</compile_context>

<pallas_src>
import math

import jax
import jax.numpy as jnp
from jax.experimental import pallas as pl
from jax.experimental.pallas import tpu as pltpu


def _mlp_kernel(x_ref, r1_ref, s1_ref, w1_ref,
                r2_ref, w2_ref,
                s2r3_ref, w3_ref,
                s3_ref,
                o_ref, acc_ref):
    # Grid: (E, B, S//TS, I//TI); reduction axis (I-tiles) is last.
    # x_ref    : (1, 1, TS, H)  f32   current (b, e, token-tile) slab
    # r1_ref   : (1, 1, H)      f32   per-ensemble input scale, layer 1
    # s1_ref   : (1, 1, TI)     f32   per-ensemble output scale (I-tile), layer 1
    # w1_ref   : (H, TI)        bf16
    # r2_ref   : (1, 1, H)      f32
    # w2_ref   : (H, TI)        bf16
    # s2r3_ref : (1, 1, TI)     f32   fused s2 * r3 (I-tile)
    # w3_ref   : (TI, H)        bf16
    # s3_ref   : (1, 1, H)      f32
    # o_ref    : (1, 1, TS, H)
    # acc_ref  : (TS, H)        f32   scratch accumulator over I-tiles
    k = pl.program_id(3)

    @pl.when(k == 0)
    def _():
        acc_ref[...] = jnp.zeros_like(acc_ref)

    x = x_ref[0, 0]                                  # (TS, H) f32
    r1 = r1_ref[0]                                   # (1, H)
    r2 = r2_ref[0]                                   # (1, H)
    s1 = s1_ref[0]                                   # (1, TI)
    s2r3 = s2r3_ref[0]                               # (1, TI)

    # bf16 operands for the MXU, f32 accumulation.
    x1 = (x * r1).astype(jnp.bfloat16)
    x2 = (x * r2).astype(jnp.bfloat16)

    h1 = jnp.dot(x1, w1_ref[...],
                 preferred_element_type=jnp.float32) * s1          # (TS, TI)
    h2 = jnp.dot(x2, w2_ref[...],
                 preferred_element_type=jnp.float32)                # (TS, TI)

    g = jax.nn.silu(h1) * (h2 * s2r3)                               # (TS, TI) f32

    acc_ref[...] += jnp.dot(g.astype(jnp.bfloat16), w3_ref[...],
                            preferred_element_type=jnp.float32)     # (TS, H)

    @pl.when(k == pl.num_programs(3) - 1)
    def _():
        s3 = s3_ref[0]                                              # (1, H)
        o_ref[0, 0] = (acc_ref[...] * s3).astype(o_ref.dtype)


def _pick_tile(dim, cap, align):
    """Largest multiple of `align` that divides `dim` and is <= cap; else `dim`."""
    best = None
    t = align
    while t <= min(dim, cap):
        if dim % t == 0:
            best = t
        t += align
    return best if best is not None else dim


def anchored_batch_mlp(x, params, *, ts=None, ti=None):
    """x: [B, E, S, H] float32.  params: dict of weights (see init_params)."""
    B, E, S, H = x.shape
    I = params["w1"].shape[1]

    TS = ts if ts is not None else _pick_tile(S, 256, 8)
    TI = ti if ti is not None else _pick_tile(I, 512, 128)
    assert S % TS == 0 and (TS % 8 == 0 or TS == S)
    assert I % TI == 0 and (TI % 128 == 0 or TI == I)
    n_t = S // TS
    n_k = I // TI

    # bf16 weights for the MXU (halves weight DMA and VMEM tile footprint).
    w1 = params["w1"].astype(jnp.bfloat16)
    w2 = params["w2"].astype(jnp.bfloat16)
    w3 = params["w3"].astype(jnp.bfloat16)

    # Per-ensemble vectors in f32, reshaped to (E, 1, F) so BlockSpec last-two
    # dims are (1, tile) / (1, F).
    def v3(p):
        return p.reshape(E, 1, p.shape[-1])

    r1 = v3(params["r1"])                      # (E, 1, H)
    r2 = v3(params["r2"])                      # (E, 1, H)
    s1 = v3(params["s1"])                      # (E, 1, I)
    s2r3 = v3(params["s2"] * params["r3"])     # (E, 1, I), exact algebraic fusion
    s3 = v3(params["s3"])                      # (E, 1, H)

    vecH_spec = pl.BlockSpec((1, 1, H), lambda e, b, t, k: (e, 0, 0))
    vecI_spec = pl.BlockSpec((1, 1, TI), lambda e, b, t, k: (e, 0, k))
    w_in_spec = pl.BlockSpec((H, TI), lambda e, b, t, k: (0, k))     # w1, w2
    w_out_spec = pl.BlockSpec((TI, H), lambda e, b, t, k: (k, 0))    # w3
    x_spec = pl.BlockSpec((1, 1, TS, H), lambda e, b, t, k: (b, e, t, 0))
    o_spec = pl.BlockSpec((1, 1, TS, H), lambda e, b, t, k: (b, e, t, 0))

    return pl.pallas_call(
        _mlp_kernel,
        out_shape=jax.ShapeDtypeStruct((B, E, S, H), x.dtype),
        grid_spec=pltpu.PrefetchScalarGridSpec(
            num_scalar_prefetch=0,
            grid=(E, B, n_t, n_k),
            in_specs=[
                x_spec,                       # x
                vecH_spec, vecI_spec, w_in_spec,   # r1, s1, W1
                vecH_spec, w_in_spec,              # r2,     W2
                vecI_spec, w_out_spec,             # s2*r3,  W3
                vecH_spec,                         # s3
            ],
            out_specs=o_spec,
            scratch_shapes=[pltpu.VMEM((TS, H), jnp.float32)],
        ),
        compiler_params=pltpu.CompilerParams(
            dimension_semantics=("parallel", "parallel", "parallel", "arbitrary"),
            vmem_limit_bytes=48 << 20,   # above 16/32 MiB defaults, under v7x 64 MiB
        ),
    )(x, r1, s1, w1, r2, w2, s2r3, w3, s3)


def init_params(key, ensemble_size, hidden_size, intermediate_size):
    """Deterministic init mirroring AnchoredBatchLinear.reset_parameters:
       W ~ N(0, std), r ~ N(1, std), s ~ N(1, std), std = sqrt(2)/sqrt(fan_in)."""
    E, H, I = ensemble_size, hidden_size, intermediate_size
    keys = jax.random.split(key, 9)

    def make(kw, kr, ks, in_f, out_f):
        std = math.sqrt(2.0) / math.sqrt(in_f)   # fan_in of weight.T = in_features
        w = std * jax.random.normal(kw, (in_f, out_f), jnp.float32)
        r = 1.0 + std * jax.random.normal(kr, (E, in_f), jnp.float32)
        s = 1.0 + std * jax.random.normal(ks, (E, out_f), jnp.float32)
        return w, r, s

    w1, r1, s1 = make(keys[0], keys[1], keys[2], H, I)
    w2, r2, s2 = make(keys[3], keys[4], keys[5], H, I)
    w3, r3, s3 = make(keys[6], keys[7], keys[8], I, H)
    return dict(w1=w1, r1=r1, s1=s1,
                w2=w2, r2=r2, s2=s2,
                w3=w3, r3=r3, s3=s3)


def reference(x, p):
    """Pure-JAX f32 reference of the PyTorch einsum semantics."""
    def lin(x, r, w, s):
        # 'B E S I, E I, I O, E O -> B E S O'
        return jnp.einsum("besi,ei,io,eo->beso", x, r, w, s)
    h = jax.nn.silu(lin(x, p["r1"], p["w1"], p["s1"])) * lin(x, p["r2"], p["w2"], p["s2"])
    return lin(h, p["r3"], p["w3"], p["s3"])


if __name__ == "__main__":
    # Small but tiling-exercising shapes: S//TS = 2 token tiles, I//TI = 4 I-tiles.
    B, E, S, H, I = 2, 2, 32, 256, 1024
    key = jax.random.PRNGKey(0)
    kx, kp = jax.random.split(key)
    x = jax.random.normal(kx, (B, E, S, H), jnp.float32)
    params = init_params(kp, E, H, I)

    out = anchored_batch_mlp(x, params, ts=16, ti=256)
    out = jax.block_until_ready(out)

    ref = reference(x, params)
    assert out.shape == (B, E, S, H)
    # bf16 MXU operands with f32 accumulation -> compare at bf16-level tolerance.
    rel_err = float(jnp.max(jnp.abs(out - ref)) / (jnp.max(jnp.abs(ref)) + 1e-6))
    assert rel_err < 2e-2, f"max relative error {rel_err}"
    print("KERNEL_OK")
</pallas_src>

<mosaic_0001>
module attributes {stable_mosaic.version = 11 : i64} {
  func.func @_mlp_kernel(%arg0: i32, %arg1: i32, %arg2: i32, %arg3: i32, %arg4: memref<1x1x16x256xf32, #tpu.memory_space<vmem>>, %arg5: memref<1x1x256xf32, #tpu.memory_space<vmem>>, %arg6: memref<1x1x256xf32, #tpu.memory_space<vmem>>, %arg7: memref<256x256xbf16, #tpu.memory_space<vmem>>, %arg8: memref<1x1x256xf32, #tpu.memory_space<vmem>>, %arg9: memref<256x256xbf16, #tpu.memory_space<vmem>>, %arg10: memref<1x1x256xf32, #tpu.memory_space<vmem>>, %arg11: memref<256x256xbf16, #tpu.memory_space<vmem>>, %arg12: memref<1x1x256xf32, #tpu.memory_space<vmem>>, %arg13: memref<1x1x16x256xf32, #tpu.memory_space<vmem>>, %arg14: memref<16x256xf32, #tpu.memory_space<vmem>>) attributes {dimension_semantics = [#tpu.dimension_semantics<parallel>, #tpu.dimension_semantics<parallel>, #tpu.dimension_semantics<parallel>, #tpu.dimension_semantics<arbitrary>], iteration_bounds = array<i64: 2, 2, 2, 4>, scalar_prefetch = 0 : i64, scratch_operands = 1 : i64, tpu.core_type = #tpu.core_type<tc>, window_params = [{transform_indices = @transform_0, window_bounds = array<i64: 1, 1, 16, 256>}, {transform_indices = @transform_1, window_bounds = array<i64: 1, 1, 256>}, {transform_indices = @transform_2, window_bounds = array<i64: 1, 1, 256>}, {transform_indices = @transform_3, window_bounds = array<i64: 256, 256>}, {transform_indices = @transform_4, window_bounds = array<i64: 1, 1, 256>}, {transform_indices = @transform_5, window_bounds = array<i64: 256, 256>}, {transform_indices = @transform_6, window_bounds = array<i64: 1, 1, 256>}, {transform_indices = @transform_7, window_bounds = array<i64: 256, 256>}, {transform_indices = @transform_8, window_bounds = array<i64: 1, 1, 256>}, {transform_indices = @transform_9, window_bounds = array<i64: 1, 1, 16, 256>}]} {
    %c0_i32 = arith.constant 0 : i32
    %0 = arith.cmpi eq, %arg3, %c0_i32 : i32
    %1 = arith.extui %0 : i1 to i32
    %c0_i32_0 = arith.constant 0 : i32
    %2 = arith.cmpi ne, %1, %c0_i32_0 : i32
    scf.if %2 {
      %cst_30 = arith.constant 0.000000e+00 : f32
      %43 = vector.broadcast %cst_30 : f32 to vector<16x256xf32>
      %c0_31 = arith.constant 0 : index
      %c0_32 = arith.constant 0 : index
      %44 = vector.load %arg14[%c0_31, %c0_32] : memref<16x256xf32, #tpu.memory_space<vmem>>, vector<16x256xf32>
      tpu.vector_store %arg14[%c0_31, %c0_32], %43 {strides = array<i32>} : memref<16x256xf32, #tpu.memory_space<vmem>>, vector<16x256xf32>,
    } else {
    }
    %c0 = arith.constant 0 : index
    %c0_1 = arith.constant 0 : index
    %c0_2 = arith.constant 0 : index
    %c0_3 = arith.constant 0 : index
    %3 = vector.load %arg4[%c0, %c0_1, %c0_2, %c0_3] : memref<1x1x16x256xf32, #tpu.memory_space<vmem>>, vector<1x1x16x256xf32>
    %4 = vector.shape_cast %3 : vector<1x1x16x256xf32> to vector<16x256xf32>
    %c0_4 = arith.constant 0 : index
    %c0_5 = arith.constant 0 : index
    %c0_6 = arith.constant 0 : index
    %5 = vector.load %arg5[%c0_4, %c0_5, %c0_6] : memref<1x1x256xf32, #tpu.memory_space<vmem>>, vector<1x1x256xf32>
    %6 = vector.shape_cast %5 : vector<1x1x256xf32> to vector<1x256xf32>
    %c0_7 = arith.constant 0 : index
    %c0_8 = arith.constant 0 : index
    %c0_9 = arith.constant 0 : index
    %7 = vector.load %arg8[%c0_7, %c0_8, %c0_9] : memref<1x1x256xf32, #tpu.memory_space<vmem>>, vector<1x1x256xf32>
    %8 = vector.shape_cast %7 : vector<1x1x256xf32> to vector<1x256xf32>
    %c0_10 = arith.constant 0 : index
    %c0_11 = arith.constant 0 : index
    %c0_12 = arith.constant 0 : index
    %9 = vector.load %arg6[%c0_10, %c0_11, %c0_12] : memref<1x1x256xf32, #tpu.memory_space<vmem>>, vector<1x1x256xf32>
    %10 = vector.shape_cast %9 : vector<1x1x256xf32> to vector<1x256xf32>
    %c0_13 = arith.constant 0 : index
    %c0_14 = arith.constant 0 : index
    %c0_15 = arith.constant 0 : index
    %11 = vector.load %arg10[%c0_13, %c0_14, %c0_15] : memref<1x1x256xf32, #tpu.memory_space<vmem>>, vector<1x1x256xf32>
    %12 = vector.shape_cast %11 : vector<1x1x256xf32> to vector<1x256xf32>
    %13 = vector.broadcast %6 : vector<1x256xf32> to vector<16x256xf32>
    %14 = arith.mulf %4, %13 : vector<16x256xf32>
    %15 = arith.truncf %14 : vector<16x256xf32> to vector<16x256xbf16>
    %16 = vector.broadcast %8 : vector<1x256xf32> to vector<16x256xf32>
    %17 = arith.mulf %4, %16 : vector<16x256xf32>
    %18 = arith.truncf %17 : vector<16x256xf32> to vector<16x256xbf16>
    %c0_16 = arith.constant 0 : index
    %c0_17 = arith.constant 0 : index
    %19 = vector.load %arg7[%c0_16, %c0_17] : memref<256x256xbf16, #tpu.memory_space<vmem>>, vector<256x256xbf16>
    %cst = arith.constant dense<0.000000e+00> : vector<16x256xf32>
    %20 = tpu.matmul %15, %19, %cst {dimension_numbers = #tpu.dot_dimension_numbers<[1], [0], [0], [1], [0, 0, 1, 1], [], []>} : vector<16x256xbf16>, vector<256x256xbf16>, vector<16x256xf32> -> vector<16x256xf32>
    %21 = vector.broadcast %10 : vector<1x256xf32> to vector<16x256xf32>
    %22 = arith.mulf %20, %21 : vector<16x256xf32>
    %c0_18 = arith.constant 0 : index
    %c0_19 = arith.constant 0 : index
    %23 = vector.load %arg9[%c0_18, %c0_19] : memref<256x256xbf16, #tpu.memory_space<vmem>>, vector<256x256xbf16>
    %cst_20 = arith.constant dense<0.000000e+00> : vector<16x256xf32>
    %24 = tpu.matmul %18, %23, %cst_20 {dimension_numbers = #tpu.dot_dimension_numbers<[1], [0], [0], [1], [0, 0, 1, 1], [], []>} : vector<16x256xbf16>, vector<256x256xbf16>, vector<16x256xf32> -> vector<16x256xf32>
    %25 = arith.negf %22 : vector<16x256xf32>
    %26 = math.exp %25 : vector<16x256xf32>
    %cst_21 = arith.constant 1.000000e+00 : f32
    %27 = vector.broadcast %cst_21 : f32 to vector<16x256xf32>
    %28 = arith.addf %27, %26 : vector<16x256xf32>
    %29 = arith.divf %27, %28 : vector<16x256xf32>
    %30 = arith.mulf %22, %29 : vector<16x256xf32>
    %31 = vector.broadcast %12 : vector<1x256xf32> to vector<16x256xf32>
    %32 = arith.mulf %24, %31 : vector<16x256xf32>
    %33 = arith.mulf %30, %32 : vector<16x256xf32>
    %c0_22 = arith.constant 0 : index
    %c0_23 = arith.constant 0 : index
    %34 = vector.load %arg14[%c0_22, %c0_23] : memref<16x256xf32, #tpu.memory_space<vmem>>, vector<16x256xf32>
    %35 = arith.truncf %33 : vector<16x256xf32> to vector<16x256xbf16>
    %c0_24 = arith.constant 0 : index
    %c0_25 = arith.constant 0 : index
    %36 = vector.load %arg11[%c0_24, %c0_25] : memref<256x256xbf16, #tpu.memory_space<vmem>>, vector<256x256xbf16>
    %cst_26 = arith.constant dense<0.000000e+00> : vector<16x256xf32>
    %37 = tpu.matmul %35, %36, %cst_26 {dimension_numbers = #tpu.dot_dimension_numbers<[1], [0], [0], [1], [0, 0, 1, 1], [], []>} : vector<16x256xbf16>, vector<256x256xbf16>, vector<16x256xf32> -> vector<16x256xf32>
    %38 = arith.addf %34, %37 : vector<16x256xf32>
    %c0_27 = arith.constant 0 : index
    %c0_28 = arith.constant 0 : index
    %39 = vector.load %arg14[%c0_27, %c0_28] : memref<16x256xf32, #tpu.memory_space<vmem>>, vector<16x256xf32>
    tpu.vector_store %arg14[%c0_27, %c0_28], %38 {strides = array<i32>} : memref<16x256xf32, #tpu.memory_space<vmem>>, vector<16x256xf32>,
    %c3_i32 = arith.constant 3 : i32
    %40 = arith.cmpi eq, %arg3, %c3_i32 : i32
    %41 = arith.extui %40 : i1 to i32
    %c0_i32_29 = arith.constant 0 : i32
    %42 = arith.cmpi ne, %41, %c0_i32_29 : i32
    scf.if %42 {
      %c0_30 = arith.constant 0 : index
      %c0_31 = arith.constant 0 : index
      %c0_32 = arith.constant 0 : index
      %43 = vector.load %arg12[%c0_30, %c0_31, %c0_32] : memref<1x1x256xf32, #tpu.memory_space<vmem>>, vector<1x1x256xf32>
      %44 = vector.shape_cast %43 : vector<1x1x256xf32> to vector<1x256xf32>
      %c0_33 = arith.constant 0 : index
      %c0_34 = arith.constant 0 : index
      %45 = vector.load %arg14[%c0_33, %c0_34] : memref<16x256xf32, #tpu.memory_space<vmem>>, vector<16x256xf32>
      %46 = vector.broadcast %44 : vector<1x256xf32> to vector<16x256xf32>
      %47 = arith.mulf %45, %46 : vector<16x256xf32>
      %c0_35 = arith.constant 0 : index
      %c0_36 = arith.constant 0 : index
      %c0_37 = arith.constant 0 : index
      %c0_38 = arith.constant 0 : index
      %48 = vector.load %arg13[%c0_35, %c0_36, %c0_37, %c0_38] : memref<1x1x16x256xf32, #tpu.memory_space<vmem>>, vector<1x1x16x256xf32>
      %49 = vector.shape_cast %48 : vector<1x1x16x256xf32> to vector<16x256xf32>
      %50 = vector.shape_cast %47 : vector<16x256xf32> to vector<1x1x16x256xf32>
      tpu.vector_store %arg13[%c0_35, %c0_36, %c0_37, %c0_38], %50 {strides = array<i32>} : memref<1x1x16x256xf32, #tpu.memory_space<vmem>>, vector<1x1x16x256xf32>,
    } else {
    }
    return
  }
  func.func @transform_0(%arg0: i32, %arg1: i32, %arg2: i32, %arg3: i32) -> (i32, i32, i32, i32) {
    %c0_i32 = arith.constant 0 : i32
    %c0_i32_0 = arith.constant 0 : i32
    return %arg1, %arg0, %arg2, %c0_i32 : i32, i32, i32, i32
  }
  func.func @transform_1(%arg0: i32, %arg1: i32, %arg2: i32, %arg3: i32) -> (i32, i32, i32) {
    %c0_i32 = arith.constant 0 : i32
    %c0_i32_0 = arith.constant 0 : i32
    %c0_i32_1 = arith.constant 0 : i32
    return %arg0, %c0_i32, %c0_i32_0 : i32, i32, i32
  }
  func.func @transform_2(%arg0: i32, %arg1: i32, %arg2: i32, %arg3: i32) -> (i32, i32, i32) {
    %c0_i32 = arith.constant 0 : i32
    %c0_i32_0 = arith.constant 0 : i32
    return %arg0, %c0_i32, %arg3 : i32, i32, i32
  }
  func.func @transform_3(%arg0: i32, %arg1: i32, %arg2: i32, %arg3: i32) -> (i32, i32) {
    %c0_i32 = arith.constant 0 : i32
    %c0_i32_0 = arith.constant 0 : i32
    return %c0_i32, %arg3 : i32, i32
  }
  func.func @transform_4(%arg0: i32, %arg1: i32, %arg2: i32, %arg3: i32) -> (i32, i32, i32) {
    %c0_i32 = arith.constant 0 : i32
    %c0_i32_0 = arith.constant 0 : i32
    %c0_i32_1 = arith.constant 0 : i32
    return %arg0, %c0_i32, %c0_i32_0 : i32, i32, i32
  }
  func.func @transform_5(%arg0: i32, %arg1: i32, %arg2: i32, %arg3: i32) -> (i32, i32) {
    %c0_i32 = arith.constant 0 : i32
    %c0_i32_0 = arith.constant 0 : i32
    return %c0_i32, %arg3 : i32, i32
  }
  func.func @transform_6(%arg0: i32, %arg1: i32, %arg2: i32, %arg3: i32) -> (i32, i32, i32) {
    %c0_i32 = arith.constant 0 : i32
    %c0_i32_0 = arith.constant 0 : i32
    return %arg0, %c0_i32, %arg3 : i32, i32, i32
  }
  func.func @transform_7(%arg0: i32, %arg1: i32, %arg2: i32, %arg3: i32) -> (i32, i32) {
    %c0_i32 = arith.constant 0 : i32
    %c0_i32_0 = arith.constant 0 : i32
    return %arg3, %c0_i32 : i32, i32
  }
  func.func @transform_8(%arg0: i32, %arg1: i32, %arg2: i32, %arg3: i32) -> (i32, i32, i32) {
    %c0_i32 = arith.constant 0 : i32
    %c0_i32_0 = arith.constant 0 : i32
    %c0_i32_1 = arith.constant 0 : i32
    return %arg0, %c0_i32, %c0_i32_0 : i32, i32, i32
  }
  func.func @transform_9(%arg0: i32, %arg1: i32, %arg2: i32, %arg3: i32) -> (i32, i32, i32, i32) {
    %c0_i32 = arith.constant 0 : i32
    %c0_i32_0 = arith.constant 0 : i32
    return %arg1, %arg0, %arg2, %c0_i32 : i32, i32, i32, i32
  }
}

</mosaic_0001>

<llo_original>
// kernel: tpu_custom_call.1
$region0: #{tpu_custom_call.1}
  #allocation0 [shape = 'u32[]', space=smem, size = 0x4, offset = 0x4, fixed_abs, tag = 'smem constant byte address 0x4 - core index']
  #allocation1 [shape = 'u32[144,128]{1,0:T(1,128)}', space=vmem, size = 0x12000, scoped, tag = 'internal scratch']
  #allocation2 [shape = 'f32[16,256]{1,0:T(8,128)}', space=vmem, size = 0x4000, scoped, tag = 'scratch operand']
  %s0 = inlined_call_operand.hbm [shape: f32[2,2,32,256], index: 0, kind: input, shape index: {}]
  %s1 = inlined_call_operand.hbm [shape: f32[2,1,256], index: 1, kind: input, shape index: {}]
  %s2 = inlined_call_operand.hbm [shape: f32[2,1,1024], index: 2, kind: input, shape index: {}]
  %s3 = inlined_call_operand.hbm [shape: bf16[256,1024], index: 3, kind: input, shape index: {}]
  %s4 = inlined_call_operand.vmem [shape: f32[2,1,256], index: 4, kind: input, shape index: {}]
  %s5 = inlined_call_operand.hbm [shape: bf16[256,1024], index: 5, kind: input, shape index: {}]
  %s6 = inlined_call_operand.vmem [shape: f32[2,1,1024], index: 6, kind: input, shape index: {}]
  %s7 = inlined_call_operand.hbm [shape: bf16[1024,256], index: 7, kind: input, shape index: {}]
  %s8 = inlined_call_operand.vmem [shape: f32[2,1,256], index: 8, kind: input, shape index: {}]
  %s9 = inlined_call_operand.hbm [shape: f32[2,2,32,256], index: 9, kind: output, shape index: {}]
  %s10 = sld [smem:[#allocation0]]
  $region101: #{tpu_custom_call.1} parent=0
    _
  %s12 = ssub.s32 1, %s10
  %s13 = scalar_select 0, %s12, %s10
  $region1: #{tpu_custom_call.1} parent=0
    #allocation3 [shape = 'u8[32768]{0}', space=vmem, size = 0x8000, scoped, tag = 'input window, operand 0']
    #allocation4 [shape = 's32[2]{0}', space=sflag, size = 0x8, scoped, tag = 'scoped memory for tpu_custom_call.1']
    #allocation5 [shape = 's32[2]{0}', space=sflag, size = 0x8, scoped, tag = 'scoped memory for tpu_custom_call.1']
    #allocation6 [shape = 'u8[2048]{0}', space=vmem, size = 0x800, scoped, tag = 'input window, operand 1']
    #allocation7 [shape = 's32[2]{0}', space=sflag, size = 0x8, scoped, tag = 'scoped memory for tpu_custom_call.1']
    #allocation8 [shape = 'u8[2048]{0}', space=vmem, size = 0x800, scoped, tag = 'input window, operand 2']
    #allocation9 [shape = 'u8[262144]{0}', space=vmem, size = 0x40000, scoped, tag = 'input window, operand 3']
    #allocation10 [shape = 's32[2]{0}', space=sflag, size = 0x8, scoped, tag = 'scoped memory for tpu_custom_call.1']
    #allocation11 [shape = 'u8[262144]{0}', space=vmem, size = 0x40000, scoped, tag = 'input window, operand 5']
    #allocation12 [shape = 'u8[262144]{0}', space=vmem, size = 0x40000, scoped, tag = 'input window, operand 7']
    #allocation13 [shape = 's32[2]{0}', space=sflag, size = 0x8, scoped, tag = 'scoped memory for tpu_custom_call.1']
    #allocation14 [shape = 'u8[32768]{0}', space=vmem, size = 0x8000, scoped, tag = 'output window, operand 0']
    %14 = vsyncpa [#allocation4], 0
    %s15 = scalar_lea.sflag [#allocation4], 1
    %16 = vsyncpa %s15, 0
    %17 = vsyncpa [#allocation7], 0
    %s18 = scalar_lea.sflag [#allocation7], 1
    %19 = vsyncpa %s18, 0
    %20 = vsyncpa [#allocation10], 0
    %s21 = scalar_lea.sflag [#allocation10], 1
    %22 = vsyncpa %s21, 0
    %23 = vsyncpa [#allocation13], 0
    %s24 = scalar_lea.sflag [#allocation13], 1
    %25 = vsyncpa %s24, 0
    %26 = vsyncpa [#allocation5], 0
    %s27 = scalar_lea.sflag [#allocation5], 1
    %28 = vsyncpa %s27, 0
    loop: start=0, step=1, limit=34
    $region2: #{tpu_custom_call.1} parent=1 // loop_pre_header
      _
    $region3: #{tpu_custom_call.1} parent=1 // loop_header
      %s30 = sphi 0, %s34
      %p31 = scmp.ge.s32.totalorder %s30, 34
      %s37 = sphi 0, %s63
      %s38 = sphi 0, %s59
      %s39 = sphi 0, %s55
      %s40 = sphi 0, %s51
      %s41 = sphi 0, %s37
      %s42 = sphi 0, %s38
      %s43 = sphi 0, %s39
      %s44 = sphi 0, %s40
      %s45 = sphi 0, %s41
      %s46 = sphi 0, %s42
      %s47 = sphi 0, %s43
      %s48 = sphi 0, %s44
      %s70 = sphi 0, %s72
      %s73 = sphi 0, %s70
      %s74 = sphi 0, %s73
      %s90 = sphi 0, %s74
      %s96 = sphi 0, %s98
      %s99 = sphi 0, %s96
      %s100 = sphi 0, %s99
      %s116 = sphi 0, %s100
      %s124 = sphi 0, %s126
      %s127 = sphi 0, %s124
      %s128 = sphi 0, %s127
      %s144 = sphi 0, %s128
      %s150 = sphi 0, %s152
      %s153 = sphi 0, %s150
      %s154 = sphi 0, %s153
      %s170 = sphi 0, %s154
      %s176 = sphi 0, %s178
      %s179 = sphi 0, %s176
      %s180 = sphi 0, %s179
      %s196 = sphi 0, %s180
      %s202 = sphi 0, %s204
      %s205 = sphi 0, %s202
      %s206 = sphi 0, %s205
      %s222 = sphi 0, %s206
      %s230 = sphi 0, %s232
      %s233 = sphi 0, %s230
      %s234 = sphi 0, %s233
      %s250 = sphi 0, %s234
      %s256 = sphi 0, %s258
      %s259 = sphi 0, %s256
      %s260 = sphi 0, %s259
      %s276 = sphi 0, %s260
      %s282 = sphi 0, %s284
      %s285 = sphi 0, %s282
      %s286 = sphi 0, %s285
      %s302 = sphi 0, %s286
      %s312 = sphi 0, %s314
      %s315 = sphi 0, %s312
      %s316 = sphi 0, %s315
      %s332 = sphi 0, %s316
    $region4: #{tpu_custom_call.1} parent=1 // loop_header_branch
      %33 = sbr.rel (%p31) target = $region8
    $region5: #{tpu_custom_call.1} parent=1 // loop_body
      %s35 = ssub.s32 %s30, 1
      %s36 = ssub.s32 %s30, 2
      %s49 = sadd.s32 1, %s40
      %p50 = scmp.ge.s32.totalorder %s49, 4
      %s51 = scalar_select %p50, 0, %s49
      %s52 = sadd.s32 1, %s39
      %s53 = scalar_select %p50, %s52, %s39
      %p54 = scmp.ge.s32.totalorder %s53, 2
      %s55 = scalar_select %p54, 0, %s53
      %s56 = sadd.s32 1, %s38
      %s57 = scalar_select %p54, %s56, %s38
      %p58 = scmp.ge.s32.totalorder %s57, 2
      %s59 = scalar_select %p58, 0, %s57
      %s60 = sadd.s32 1, %s37
      %s61 = scalar_select %p58, %s60, %s37
      %p62 = scmp.ge.s32.totalorder %s61, 2
      %s63 = scalar_select %p62, 0, %s61
      %s64 = ssub.s32 %s38, %s59
      %s65 = ssub.s32 %s37, %s63
      %s66 = sor.u32 %s64, %s65
      %s67 = ssub.s32 %s39, %s55
      %s68 = sor.u32 %s66, %s67
      %p69 = scmp.eq.s32.totalorder %s68, 0
      %s71 = sadd.s32 %s70, 1
      %s72 = scalar_select %p69, %s70, %s71
      %p75 = pneg %p69
      %p76 = scmp.eq.s32.totalorder %s30, 31
      %p77 = por %p75, %p76
      %p78 = scmp.ne.s32.totalorder %s70, %s73
      %p79 = scmp.eq.s32.totalorder %s30, 0
      %p80 = por %p78, %p79
      %p81 = scmp.ne.s32.totalorder %s70, %s73
      %p82 = scmp.eq.s32.totalorder %s35, 31
      %p83 = por %p81, %p82
      %p84 = scmp.ne.s32.totalorder %s73, %s74
      %p85 = scmp.eq.s32.totalorder %s35, 0
      %p86 = por %p84, %p85
      %p87 = scmp.ne.s32.totalorder %s73, %s74
      %p88 = scmp.eq.s32.totalorder %s36, 31
      %p89 = por %p87, %p88
      %p91 = scmp.ne.s32.totalorder %s74, %s90
      %p92 = scmp.eq.s32.totalorder %s36, 0
      %p93 = por %p91, %p92
      %s94 = ssub.s32 %s37, %s63
      %p95 = scmp.eq.s32.totalorder %s94, 0
      %s97 = sadd.s32 %s96, 1
      %s98 = scalar_select %p95, %s96, %s97
      %p101 = pneg %p95
      %p102 = scmp.eq.s32.totalorder %s30, 31
      %p103 = por %p101, %p102
      %p104 = scmp.ne.s32.totalorder %s96, %s99
      %p105 = scmp.eq.s32.totalorder %s30, 0
      %p106 = por %p104, %p105
      %p107 = scmp.ne.s32.totalorder %s96, %s99
      %p108 = scmp.eq.s32.totalorder %s35, 31
      %p109 = por %p107, %p108
      %p110 = scmp.ne.s32.totalorder %s99, %s100
      %p111 = scmp.eq.s32.totalorder %s35, 0
      %p112 = por %p110, %p111
      %p113 = scmp.ne.s32.totalorder %s99, %s100
      %p114 = scmp.eq.s32.totalorder %s36, 31
      %p115 = por %p113, %p114
      %p117 = scmp.ne.s32.totalorder %s100, %s116
      %p118 = scmp.eq.s32.totalorder %s36, 0
      %p119 = por %p117, %p118
      %s120 = ssub.s32 %s37, %s63
      %s121 = ssub.s32 %s40, %s51
      %s122 = sor.u32 %s120, %s121
      %p123 = scmp.eq.s32.totalorder %s122, 0
      %s125 = sadd.s32 %s124, 1
      %s126 = scalar_select %p123, %s124, %s125
      %p129 = pneg %p123
      %p130 = scmp.eq.s32.totalorder %s30, 31
      %p131 = por %p129, %p130
      %p132 = scmp.ne.s32.totalorder %s124, %s127
      %p133 = scmp.eq.s32.totalorder %s30, 0
      %p134 = por %p132, %p133
      %p135 = scmp.ne.s32.totalorder %s124, %s127
      %p136 = scmp.eq.s32.totalorder %s35, 31
      %p137 = por %p135, %p136
      %p138 = scmp.ne.s32.totalorder %s127, %s128
      %p139 = scmp.eq.s32.totalorder %s35, 0
      %p140 = por %p138, %p139
      %p141 = scmp.ne.s32.totalorder %s127, %s128
      %p142 = scmp.eq.s32.totalorder %s36, 31
      %p143 = por %p141, %p142
      %p145 = scmp.ne.s32.totalorder %s128, %s144
      %p146 = scmp.eq.s32.totalorder %s36, 0
      %p147 = por %p145, %p146
      %s148 = ssub.s32 %s40, %s51
      %p149 = scmp.eq.s32.totalorder %s148, 0
      %s151 = sadd.s32 %s150, 1
      %s152 = scalar_select %p149, %s150, %s151
      %p155 = pneg %p149
      %p156 = scmp.eq.s32.totalorder %s30, 31
      %p157 = por %p155, %p156
      %p158 = scmp.ne.s32.totalorder %s150, %s153
      %p159 = scmp.eq.s32.totalorder %s30, 0
      %p160 = por %p158, %p159
      %p161 = scmp.ne.s32.totalorder %s150, %s153
      %p162 = scmp.eq.s32.totalorder %s35, 31
      %p163 = por %p161, %p162
      %p164 = scmp.ne.s32.totalorder %s153, %s154
      %p165 = scmp.eq.s32.totalorder %s35, 0
      %p166 = por %p164, %p165
      %p167 = scmp.ne.s32.totalorder %s153, %s154
      %p168 = scmp.eq.s32.totalorder %s36, 31
      %p169 = por %p167, %p168
      %p171 = scmp.ne.s32.totalorder %s154, %s170
      %p172 = scmp.eq.s32.totalorder %s36, 0
      %p173 = por %p171, %p172
      %s174 = ssub.s32 %s37, %s63
      %p175 = scmp.eq.s32.totalorder %s174, 0
      %s177 = sadd.s32 %s176, 1
      %s178 = scalar_select %p175, %s176, %s177
      %p181 = pneg %p175
      %p182 = scmp.eq.s32.totalorder %s30, 31
      %p183 = por %p181, %p182
      %p184 = scmp.ne.s32.totalorder %s176, %s179
      %p185 = scmp.eq.s32.totalorder %s30, 0
      %p186 = por %p184, %p185
      %p187 = scmp.ne.s32.totalorder %s176, %s179
      %p188 = scmp.eq.s32.totalorder %s35, 31
      %p189 = por %p187, %p188
      %p190 = scmp.ne.s32.totalorder %s179, %s180
      %p191 = scmp.eq.s32.totalorder %s35, 0
      %p192 = por %p190, %p191
      %p193 = scmp.ne.s32.totalorder %s179, %s180
      %p194 = scmp.eq.s32.totalorder %s36, 31
      %p195 = por %p193, %p194
      %p197 = scmp.ne.s32.totalorder %s180, %s196
      %p198 = scmp.eq.s32.totalorder %s36, 0
      %p199 = por %p197, %p198
      %s200 = ssub.s32 %s40, %s51
      %p201 = scmp.eq.s32.totalorder %s200, 0
      %s203 = sadd.s32 %s202, 1
      %s204 = scalar_select %p201, %s202, %s203
      %p207 = pneg %p201
      %p208 = scmp.eq.s32.totalorder %s30, 31
      %p209 = por %p207, %p208
      %p210 = scmp.ne.s32.totalorder %s202, %s205
      %p211 = scmp.eq.s32.totalorder %s30, 0
      %p212 = por %p210, %p211
      %p213 = scmp.ne.s32.totalorder %s202, %s205
      %p214 = scmp.eq.s32.totalorder %s35, 31
      %p215 = por %p213, %p214
      %p216 = scmp.ne.s32.totalorder %s205, %s206
      %p217 = scmp.eq.s32.totalorder %s35, 0
      %p218 = por %p216, %p217
      %p219 = scmp.ne.s32.totalorder %s205, %s206
      %p220 = scmp.eq.s32.totalorder %s36, 31
      %p221 = por %p219, %p220
      %p223 = scmp.ne.s32.totalorder %s206, %s222
      %p224 = scmp.eq.s32.totalorder %s36, 0
      %p225 = por %p223, %p224
      %s226 = ssub.s32 %s37, %s63
      %s227 = ssub.s32 %s40, %s51
      %s228 = sor.u32 %s226, %s227
      %p229 = scmp.eq.s32.totalorder %s228, 0
      %s231 = sadd.s32 %s230, 1
      %s232 = scalar_select %p229, %s230, %s231
      %p235 = pneg %p229
      %p236 = scmp.eq.s32.totalorder %s30, 31
      %p237 = por %p235, %p236
      %p238 = scmp.ne.s32.totalorder %s230, %s233
      %p239 = scmp.eq.s32.totalorder %s30, 0
      %p240 = por %p238, %p239
      %p241 = scmp.ne.s32.totalorder %s230, %s233
      %p242 = scmp.eq.s32.totalorder %s35, 31
      %p243 = por %p241, %p242
      %p244 = scmp.ne.s32.totalorder %s233, %s234
      %p245 = scmp.eq.s32.totalorder %s35, 0
      %p246 = por %p244, %p245
      %p247 = scmp.ne.s32.totalorder %s233, %s234
      %p248 = scmp.eq.s32.totalorder %s36, 31
      %p249 = por %p247, %p248
      %p251 = scmp.ne.s32.totalorder %s234, %s250
      %p252 = scmp.eq.s32.totalorder %s36, 0
      %p253 = por %p251, %p252
      %s254 = ssub.s32 %s40, %s51
      %p255 = scmp.eq.s32.totalorder %s254, 0
      %s257 = sadd.s32 %s256, 1
      %s258 = scalar_select %p255, %s256, %s257
      %p261 = pneg %p255
      %p262 = scmp.eq.s32.totalorder %s30, 31
      %p263 = por %p261, %p262
      %p264 = scmp.ne.s32.totalorder %s256, %s259
      %p265 = scmp.eq.s32.totalorder %s30, 0
      %p266 = por %p264, %p265
      %p267 = scmp.ne.s32.totalorder %s256, %s259
      %p268 = scmp.eq.s32.totalorder %s35, 31
      %p269 = por %p267, %p268
      %p270 = scmp.ne.s32.totalorder %s259, %s260
      %p271 = scmp.eq.s32.totalorder %s35, 0
      %p272 = por %p270, %p271
      %p273 = scmp.ne.s32.totalorder %s259, %s260
      %p274 = scmp.eq.s32.totalorder %s36, 31
      %p275 = por %p273, %p274
      %p277 = scmp.ne.s32.totalorder %s260, %s276
      %p278 = scmp.eq.s32.totalorder %s36, 0
      %p279 = por %p277, %p278
      %s280 = ssub.s32 %s37, %s63
      %p281 = scmp.eq.s32.totalorder %s280, 0
      %s283 = sadd.s32 %s282, 1
      %s284 = scalar_select %p281, %s282, %s283
      %p287 = pneg %p281
      %p288 = scmp.eq.s32.totalorder %s30, 31
      %p289 = por %p287, %p288
      %p290 = scmp.ne.s32.totalorder %s282, %s285
      %p291 = scmp.eq.s32.totalorder %s30, 0
      %p292 = por %p290, %p291
      %p293 = scmp.ne.s32.totalorder %s282, %s285
      %p294 = scmp.eq.s32.totalorder %s35, 31
      %p295 = por %p293, %p294
      %p296 = scmp.ne.s32.totalorder %s285, %s286
      %p297 = scmp.eq.s32.totalorder %s35, 0
      %p298 = por %p296, %p297
      %p299 = scmp.ne.s32.totalorder %s285, %s286
      %p300 = scmp.eq.s32.totalorder %s36, 31
      %p301 = por %p299, %p300
      %p303 = scmp.ne.s32.totalorder %s286, %s302
      %p304 = scmp.eq.s32.totalorder %s36, 0
      %p305 = por %p303, %p304
      %s306 = ssub.s32 %s38, %s59
      %s307 = ssub.s32 %s37, %s63
      %s308 = sor.u32 %s306, %s307
      %s309 = ssub.s32 %s39, %s55
      %s310 = sor.u32 %s308, %s309
      %p311 = scmp.eq.s32.totalorder %s310, 0
      %s313 = sadd.s32 %s312, 1
      %s314 = scalar_select %p311, %s312, %s313
      %p317 = pneg %p311
      %p318 = scmp.eq.s32.totalorder %s30, 31
      %p319 = por %p317, %p318
      %p320 = scmp.ne.s32.totalorder %s312, %s315
      %p321 = scmp.eq.s32.totalorder %s30, 0
      %p322 = por %p320, %p321
      %p323 = scmp.ne.s32.totalorder %s312, %s315
      %p324 = scmp.eq.s32.totalorder %s35, 31
      %p325 = por %p323, %p324
      %p326 = scmp.ne.s32.totalorder %s315, %s316
      %p327 = scmp.eq.s32.totalorder %s35, 0
      %p328 = por %p326, %p327
      %p329 = scmp.ne.s32.totalorder %s315, %s316
      %p330 = scmp.eq.s32.totalorder %s36, 31
      %p331 = por %p329, %p330
      %p333 = scmp.ne.s32.totalorder %s316, %s332
      %p334 = scmp.eq.s32.totalorder %s36, 0
      %p335 = por %p333, %p334
      %p336 = scmp.le.s32.totalorder 1, %s30
      %p337 = scmp.lt.s32.totalorder %s30, 33
      %p338 = pnand %p336, %p337
      %p339 = pneg %p338
      // Predicated region
      $region9: #{tpu_custom_call.1} parent=5 // pred_check
        _
      $region10: #{tpu_custom_call.1} parent=5 // pred_check_branch
        %341 = sbr.rel (%p338) target = $region12
      $region11: #{tpu_custom_call.1} parent=5 // pred_region
        %s342 = ssub.s32 %s30, 1
      $region12: #{tpu_custom_call.1} parent=5 // pred_fallthru
        _
      %p343 = scmp.lt.s32.totalorder %s30, 32
      // Predicated region
      $region13: #{tpu_custom_call.1} parent=5 // pred_check
        %p344 = pneg %p343
      $region14: #{tpu_custom_call.1} parent=5 // pred_check_branch
        %346 = sbr.rel (%p344) target = $region16
      $region15: #{tpu_custom_call.1} parent=5 // pred_region
        // Predicated region
        $region17: #{tpu_custom_call.1} parent=15 // pred_check
          %p347 = pneg %p80
        $region18: #{tpu_custom_call.1} parent=15 // pred_check_branch
          %349 = sbr.rel (%p347) target = $region20
        $region19: #{tpu_custom_call.1} parent=15 // pred_region
          %s350 = sand.u32 %s70, 1
          %s351 = scalar_lea.sflag [#allocation4], %s350
          %s352 = sand.u32 %s70, 1
          %s353 = smul.addr %s352, 32
          %s354 = scalar_lea.vmem [#allocation3], %s353
          %s355 = smul.u32 2, %s39
          %s357 = ssub.s32 512, 512
          %358 = vsyncadd %s351, %s357
          %s359 = smul.addr %s355, 2
          %s360 = smul.addr %s37, 8
          %s361 = sadd.s32 %s359, %s360
          %s362 = smul.addr %s38, 16
          %s363 = sadd.s32 %s361, %s362
          %s364 = smul.addr %s363, 128
          %s365 = scalar_lea.hbm %s0, %s364
          %s366 = sshll.u32 %s354, 4
          %s367 = int_to_ptr.vmem [resolvable:$true] %s366
          %372 = dma.hbm_to_vmem [thread:$0]  %s365, 512, %s367, %s351, 256, 256, 16
        $region20: #{tpu_custom_call.1} parent=15 // pred_fallthru
          _
        // Predicated region
        $region21: #{tpu_custom_call.1} parent=15 // pred_check
          %p373 = pneg %p106
        $region22: #{tpu_custom_call.1} parent=15 // pred_check_branch
          %375 = sbr.rel (%p373) target = $region24
        $region23: #{tpu_custom_call.1} parent=15 // pred_region
          %s376 = sand.u32 %s30, 1
          %s377 = scalar_lea.sflag [#allocation7], %s376
          %s378 = sand.u32 %s96, 1
          %s379 = smul.addr %s378, 2
          %s380 = scalar_lea.vmem [#allocation6], %s379
          %s382 = ssub.s32 32, 32
          %383 = vsyncadd %s377, %s382
          %s384 = smul.addr %s37, 2
          %s385 = smul.addr %s384, 16
          %s386 = scalar_lea.hbm %s1, %s385
          %s388 = sshll.u32 %s380, 4
          %s389 = int_to_ptr.vmem [resolvable:$true] %s388
          %391 = dma.hbm_to_vmem [thread:$0]  %s386, 32, %s389, %s377
        $region24: #{tpu_custom_call.1} parent=15 // pred_fallthru
          _
        // Predicated region
        $region25: #{tpu_custom_call.1} parent=15 // pred_check
          %p392 = pneg %p134
        $region26: #{tpu_custom_call.1} parent=15 // pred_check_branch
          %394 = sbr.rel (%p392) target = $region28
        $region27: #{tpu_custom_call.1} parent=15 // pred_region
          %s395 = sand.u32 %s30, 1
          %s396 = scalar_lea.sflag [#allocation7], %s395
          %s397 = sand.u32 %s124, 1
          %s398 = smul.addr %s397, 2
          %s399 = scalar_lea.vmem [#allocation8], %s398
          %s400 = smul.u32 2, %s40
          %s402 = ssub.s32 32, 32
          %403 = vsyncadd %s396, %s402
          %s404 = smul.addr %s37, 8
          %s405 = sadd.s32 %s400, %s404
          %s406 = smul.addr %s405, 16
          %s407 = scalar_lea.hbm %s2, %s406
          %s409 = sshll.u32 %s399, 4
          %s410 = int_to_ptr.vmem [resolvable:$true] %s409
          %412 = dma.hbm_to_vmem [thread:$0]  %s407, 32, %s410, %s396
        $region28: #{tpu_custom_call.1} parent=15 // pred_fallthru
          _
        // Predicated region
        $region29: #{tpu_custom_call.1} parent=15 // pred_check
          %p413 = pneg %p160
        $region30: #{tpu_custom_call.1} parent=15 // pred_check_branch
          %415 = sbr.rel (%p413) target = $region32
        $region31: #{tpu_custom_call.1} parent=15 // pred_region
          %s416 = sand.u32 %s30, 1
          %s417 = scalar_lea.sflag [#allocation10], %s416
          %s418 = sand.u32 %s150, 1
          %s419 = smul.addr %s418, 256
          %s420 = scalar_lea.vmem [#allocation9], %s419
          %s421 = smul.u32 2, %s40
          %s423 = ssub.s32 4096, 4096
          %424 = vsyncadd %s417, %s423
          %s425 = smul.addr %s421, 64
          %s426 = scalar_lea.hbm %s3, %s425
          %s427 = sshll.u32 %s420, 4
          %s428 = int_to_ptr.vmem [resolvable:$true] %s427
          %433 = dma.hbm_to_vmem [thread:$0]  %s426, 4096, %s428, %s417, 512, 128, 8
        $region32: #{tpu_custom_call.1} parent=15 // pred_fallthru
          _
        // Predicated region
        $region33: #{tpu_custom_call.1} parent=15 // pred_check
          %p434 = pneg %p186
        $region34: #{tpu_custom_call.1} parent=15 // pred_check_branch
          %436 = sbr.rel (%p434) target = $region36
        $region35: #{tpu_custom_call.1} parent=15 // pred_region
          %p437 = scmp.lt.s32.totalorder %s37, 1
          %s438 = scalar_select %p437, %s37, 1
          %s439 = smul.addr %s438, 2
          %s440 = scalar_lea.vmem %s4, %s439
        $region36: #{tpu_custom_call.1} parent=15 // pred_fallthru
          _
        // Predicated region
        $region37: #{tpu_custom_call.1} parent=15 // pred_check
          %p441 = pneg %p212
        $region38: #{tpu_custom_call.1} parent=15 // pred_check_branch
          %443 = sbr.rel (%p441) target = $region40
        $region39: #{tpu_custom_call.1} parent=15 // pred_region
          %s444 = sand.u32 %s30, 1
          %s445 = scalar_lea.sflag [#allocation10], %s444
          %s446 = sand.u32 %s202, 1
          %s447 = smul.addr %s446, 256
          %s448 = scalar_lea.vmem [#allocation11], %s447
          %s449 = smul.u32 2, %s40
          %s451 = ssub.s32 4096, 4096
          %452 = vsyncadd %s445, %s451
          %s453 = smul.addr %s449, 64
          %s454 = scalar_lea.hbm %s5, %s453
          %s455 = sshll.u32 %s448, 4
          %s456 = int_to_ptr.vmem [resolvable:$true] %s455
          %461 = dma.hbm_to_vmem [thread:$0]  %s454, 4096, %s456, %s445, 512, 128, 8
        $region40: #{tpu_custom_call.1} parent=15 // pred_fallthru
          _
        // Predicated region
        $region41: #{tpu_custom_call.1} parent=15 // pred_check
          %p462 = pneg %p240
        $region42: #{tpu_custom_call.1} parent=15 // pred_check_branch
          %464 = sbr.rel (%p462) target = $region44
        $region43: #{tpu_custom_call.1} parent=15 // pred_region
          %s465 = smul.u32 2, %s40
          %p466 = scmp.lt.s32.totalorder %s37, 1
          %s467 = scalar_select %p466, %s37, 1
          %p468 = scmp.lt.s32.totalorder %s465, 7
          %s469 = scalar_select %p468, %s465, 7
          %s470 = smul.addr %s467, 8
          %s471 = sadd.s32 %s469, %s470
          %s472 = scalar_lea.vmem %s6, %s471
          %s473 = smul.u32 2, %s40
        $region44: #{tpu_custom_call.1} parent=15 // pred_fallthru
          _
        // Predicated region
        $region45: #{tpu_custom_call.1} parent=15 // pred_check
          %p474 = pneg %p266
        $region46: #{tpu_custom_call.1} parent=15 // pred_check_branch
          %476 = sbr.rel (%p474) target = $region48
        $region47: #{tpu_custom_call.1} parent=15 // pred_region
          %s477 = sand.u32 %s256, 1
          %s478 = scalar_lea.sflag [#allocation13], %s477
          %s479 = sand.u32 %s256, 1
          %s480 = smul.addr %s479, 256
          %s481 = scalar_lea.vmem [#allocation12], %s480
          %s482 = smul.u32 32, %s40
          %s484 = ssub.s32 4096, 4096
          %485 = vsyncadd %s478, %s484
          %s486 = smul.addr %s482, 2
          %s487 = smul.addr %s486, 64
          %s488 = scalar_lea.hbm %s7, %s487
          %s489 = sshll.u32 %s481, 4
          %s490 = int_to_ptr.vmem [resolvable:$true] %s489
          %495 = dma.hbm_to_vmem [thread:$0]  %s488, 4096, %s490, %s478, 128, 128, 8
        $region48: #{tpu_custom_call.1} parent=15 // pred_fallthru
          _
        // Predicated region
        $region49: #{tpu_custom_call.1} parent=15 // pred_check
          %p496 = pneg %p292
        $region50: #{tpu_custom_call.1} parent=15 // pred_check_branch
          %498 = sbr.rel (%p496) target = $region52
        $region51: #{tpu_custom_call.1} parent=15 // pred_region
          %p499 = scmp.lt.s32.totalorder %s37, 1
          %s500 = scalar_select %p499, %s37, 1
          %s501 = smul.addr %s500, 2
          %s502 = scalar_lea.vmem %s8, %s501
        $region52: #{tpu_custom_call.1} parent=15 // pred_fallthru
          _
      $region16: #{tpu_custom_call.1} parent=5 // pred_fallthru
        _
      %p503 = scmp.le.s32.totalorder 1, %s30
      %p504 = scmp.lt.s32.totalorder %s30, 33
      %p505 = pnand %p503, %p504
      %p506 = pneg %p505
      // Predicated region
      $region53: #{tpu_custom_call.1} parent=5 // pred_check
        _
      $region54: #{tpu_custom_call.1} parent=5 // pred_check_branch
        %508 = sbr.rel (%p505) target = $region56
      $region55: #{tpu_custom_call.1} parent=5 // pred_region
        %s509 = ssub.s32 %s30, 1
        %s510 = sand.u32 %s73, 1
        %s511 = scalar_lea.sflag [#allocation4], %s510
        %s512 = sand.u32 %s73, 1
        %s513 = smul.addr %s512, 32
        %s514 = scalar_lea.vmem [#allocation3], %s513
        // Predicated region
        $region57: #{tpu_custom_call.1} parent=55 // pred_check
          %p515 = pneg %p86
        $region58: #{tpu_custom_call.1} parent=55 // pred_check_branch
          %517 = sbr.rel (%p515) target = $region60
        $region59: #{tpu_custom_call.1} parent=55 // pred_region
          %518 = dma.done %s511, 512
        $region60: #{tpu_custom_call.1} parent=55 // pred_fallthru
          _
        %s519 = sand.u32 %s35, 1
        %s520 = scalar_lea.sflag [#allocation7], %s519
        %s521 = sand.u32 %s99, 1
        %s522 = smul.addr %s521, 2
        %s523 = scalar_lea.vmem [#allocation6], %s522
        // Predicated region
        $region61: #{tpu_custom_call.1} parent=55 // pred_check
          %p524 = pneg %p112
        $region62: #{tpu_custom_call.1} parent=55 // pred_check_branch
          %526 = sbr.rel (%p524) target = $region64
        $region63: #{tpu_custom_call.1} parent=55 // pred_region
          %527 = dma.done %s520, 32
        $region64: #{tpu_custom_call.1} parent=55 // pred_fallthru
          _
        %s528 = sand.u32 %s35, 1
        %s529 = scalar_lea.sflag [#allocation7], %s528
        %s530 = sand.u32 %s127, 1
        %s531 = smul.addr %s530, 2
        %s532 = scalar_lea.vmem [#allocation8], %s531
        // Predicated region
        $region65: #{tpu_custom_call.1} parent=55 // pred_check
          %p533 = pneg %p140
        $region66: #{tpu_custom_call.1} parent=55 // pred_check_branch
          %535 = sbr.rel (%p533) target = $region68
        $region67: #{tpu_custom_call.1} parent=55 // pred_region
          %536 = dma.done %s529, 32
        $region68: #{tpu_custom_call.1} parent=55 // pred_fallthru
          _
        %s537 = sand.u32 %s35, 1
        %s538 = scalar_lea.sflag [#allocation10], %s537
        %s539 = sand.u32 %s153, 1
        %s540 = smul.addr %s539, 256
        %s541 = scalar_lea.vmem [#allocation9], %s540
        // Predicated region
        $region69: #{tpu_custom_call.1} parent=55 // pred_check
          %p542 = pneg %p166
        $region70: #{tpu_custom_call.1} parent=55 // pred_check_branch
          %544 = sbr.rel (%p542) target = $region72
        $region71: #{tpu_custom_call.1} parent=55 // pred_region
          %545 = dma.done %s538, 4096
        $region72: #{tpu_custom_call.1} parent=55 // pred_fallthru
          _
        %s546 = sand.u32 %s35, 1
        %s547 = scalar_lea.sflag [#allocation10], %s546
        %s548 = sand.u32 %s205, 1
        %s549 = smul.addr %s548, 256
        %s550 = scalar_lea.vmem [#allocation11], %s549
        // Predicated region
        $region73: #{tpu_custom_call.1} parent=55 // pred_check
          %p551 = pneg %p218
        $region74: #{tpu_custom_call.1} parent=55 // pred_check_branch
          %553 = sbr.rel (%p551) target = $region76
        $region75: #{tpu_custom_call.1} parent=55 // pred_region
          %554 = dma.done %s547, 4096
        $region76: #{tpu_custom_call.1} parent=55 // pred_fallthru
          _
        %s555 = sand.u32 %s259, 1
        %s556 = scalar_lea.sflag [#allocation13], %s555
        %s557 = sand.u32 %s259, 1
        %s558 = smul.addr %s557, 256
        %s559 = scalar_lea.vmem [#allocation12], %s558
        // Predicated region
        $region77: #{tpu_custom_call.1} parent=55 // pred_check
          %p560 = pneg %p272
        $region78: #{tpu_custom_call.1} parent=55 // pred_check_branch
          %562 = sbr.rel (%p560) target = $region80
        $region79: #{tpu_custom_call.1} parent=55 // pred_region
          %563 = dma.done %s556, 4096
        $region80: #{tpu_custom_call.1} parent=55 // pred_fallthru
          _
        %s564 = sand.u32 %s73, 1
        %s565 = scalar_lea.sflag [#allocation4], %s564
        %s566 = sand.u32 %s73, 1
        %s567 = smul.addr %s566, 32
        %s568 = scalar_lea.vmem [#allocation3], %s567
        %p569 = pneg %p86
        %p570 = pneg %p83
        %s571 = sand.u32 %s35, 1
        %s572 = scalar_lea.sflag [#allocation7], %s571
        %s573 = sand.u32 %s99, 1
        %s574 = smul.addr %s573, 2
        %s575 = scalar_lea.vmem [#allocation6], %s574
        %p576 = pneg %p112
        %p577 = pneg %p109
        %s578 = sand.u32 %s35, 1
        %s579 = scalar_lea.sflag [#allocation7], %s578
        %s580 = sand.u32 %s127, 1
        %s581 = smul.addr %s580, 2
        %s582 = scalar_lea.vmem [#allocation8], %s581
        %p583 = pneg %p140
        %p584 = pneg %p137
        %s585 = sand.u32 %s35, 1
        %s586 = scalar_lea.sflag [#allocation10], %s585
        %s587 = sand.u32 %s153, 1
        %s588 = smul.addr %s587, 256
        %s589 = scalar_lea.vmem [#allocation9], %s588
        %p590 = pneg %p166
        %p591 = pneg %p163
        %p592 = scmp.lt.s32.totalorder %s41, 1
        %s593 = scalar_select %p592, %s41, 1
        %s594 = smul.addr %s593, 2
        %s595 = scalar_lea.vmem %s4, %s594
        %p596 = pneg %p192
        %p597 = pneg %p189
        %s598 = sand.u32 %s35, 1
        %s599 = scalar_lea.sflag [#allocation10], %s598
        %s600 = sand.u32 %s205, 1
        %s601 = smul.addr %s600, 256
        %s602 = scalar_lea.vmem [#allocation11], %s601
        %p603 = pneg %p218
        %p604 = pneg %p215
        %s605 = smul.u32 2, %s44
        %p606 = scmp.lt.s32.totalorder %s41, 1
        %s607 = scalar_select %p606, %s41, 1
        %p608 = scmp.lt.s32.totalorder %s605, 7
        %s609 = scalar_select %p608, %s605, 7
        %s610 = smul.addr %s607, 8
        %s611 = sadd.s32 %s609, %s610
        %s612 = scalar_lea.vmem %s6, %s611
        %p613 = pneg %p246
        %p614 = pneg %p243
        %s615 = sand.u32 %s259, 1
        %s616 = scalar_lea.sflag [#allocation13], %s615
        %s617 = sand.u32 %s259, 1
        %s618 = smul.addr %s617, 256
        %s619 = scalar_lea.vmem [#allocation12], %s618
        %p620 = pneg %p272
        %p621 = pneg %p269
        %p622 = scmp.lt.s32.totalorder %s41, 1
        %s623 = scalar_select %p622, %s41, 1
        %s624 = smul.addr %s623, 2
        %s625 = scalar_lea.vmem %s8, %s624
        %p626 = pneg %p298
        %p627 = pneg %p295
        %p628 = pneg %p328
        %p629 = pneg %p325
        %s630 = sand.u32 %s315, 1
        %s631 = scalar_lea.sflag [#allocation5], %s630
        %s632 = sand.u32 %s315, 1
        %s633 = smul.addr %s632, 32
        %s634 = scalar_lea.vmem [#allocation14], %s633
        %s635 = smul.u32 2, %s43
        %s636 = smul.u32 2, %s44
        %s637 = smul.u32 2, %s44
        %p638 = scmp.lt.s32.totalorder %s41, 1
        %s639 = scalar_select %p638, %s41, 1
        %s640 = smul.addr %s639, 2
        %s641 = scalar_lea.vmem %s4, %s640
        %s642 = smul.u32 2, %s44
        %s643 = smul.u32 2, %s44
        %p644 = scmp.lt.s32.totalorder %s41, 1
        %s645 = scalar_select %p644, %s41, 1
        %p646 = scmp.lt.s32.totalorder %s643, 7
        %s647 = scalar_select %p646, %s643, 7
        %s648 = smul.addr %s645, 8
        %s649 = sadd.s32 %s647, %s648
        %s650 = scalar_lea.vmem %s6, %s649
        %s651 = smul.u32 2, %s44
        %s652 = smul.u32 32, %s44
        %p653 = scmp.lt.s32.totalorder %s41, 1
        %s654 = scalar_select %p653, %s41, 1
        %s655 = smul.addr %s654, 2
        %s656 = scalar_lea.vmem %s8, %s655
        %s657 = smul.u32 2, %s43
        %p658 = scmp.eq.s32.totalorder %s44, 0
        // Predicated region
        $region81: #{tpu_custom_call.1} parent=55 // pred_check
          %p659 = pneg %p658
        $region82: #{tpu_custom_call.1} parent=55 // pred_check_branch
          %661 = sbr.rel (%p659) target = $region84
        $region83: #{tpu_custom_call.1} parent=55 // pred_region
          %662 = vst [vmem:[#allocation2] sm:$0xff] 0.0
          %663 = vst [vmem:[#allocation2 + $0x8] sm:$0xff] 0.0
          %664 = vst [vmem:[#allocation2 + $0x10] sm:$0xff] 0.0
          %665 = vst [vmem:[#allocation2 + $0x18] sm:$0xff] 0.0
        $region84: #{tpu_custom_call.1} parent=55 // pred_fallthru
          _
        %v666 = vld [vmem:[%s514] sm:$0xff]
        %v667 = vld [vmem:[%s514 + $0x8] sm:$0xff]
        %v668 = vld [vmem:[%s514 + $0x10] sm:$0xff]
        %v669 = vld [vmem:[%s514 + $0x18] sm:$0xff]
        %v670 = vld [vmem:[%s523] sm:$0x3]
        %v671 = vld [vmem:[%s641] sm:$0x3]
        %v672 = vld [vmem:[%s532] sm:$0x3]
        %v673 = vld [vmem:[%s650] sm:$0x3]
        %v675 = vlaneseq
        %v676 = vshrl.u32 %v675, 7
        %v677 = vsub.s32 0, %v676
        %v678 = vrot.slane %v670, %v677
        %v679 = vlaneseq
        %v680 = vshrl.u32 %v679, 7
        %v681 = vsub.s32 1, %v680
        %v682 = vrot.slane %v670, %v681
        %v685 = vmul.f32 %v666, %v678
        %v686 = vmul.f32 %v667, %v682
        %v687 = vmul.f32 %v668, %v678
        %v688 = vmul.f32 %v669, %v682
        %v689 = vpack.c.bf16 %v687, %v685
        %v690 = vpack.c.bf16 %v688, %v686
        %v692 = vlaneseq
        %v693 = vshrl.u32 %v692, 7
        %v694 = vsub.s32 0, %v693
        %v695 = vrot.slane %v671, %v694
        %v696 = vlaneseq
        %v697 = vshrl.u32 %v696, 7
        %v698 = vsub.s32 1, %v697
        %v699 = vrot.slane %v671, %v698
        %v702 = vmul.f32 %v666, %v695
        %v703 = vmul.f32 %v667, %v699
        %v704 = vmul.f32 %v668, %v695
        %v705 = vmul.f32 %v669, %v699
        %v706 = vpack.c.bf16 %v704, %v702
        %v707 = vpack.c.bf16 %v705, %v703
        %v708 = vld [vmem:[%s541] sm:$0xff]
        %v709 = vld [vmem:[%s541 + $0x8] sm:$0xff]
        %v710 = vld [vmem:[%s541 + $0x10] sm:$0xff]
        %v711 = vld [vmem:[%s541 + $0x18] sm:$0xff]
        %v712 = vld [vmem:[%s541 + $0x20] sm:$0xff]
        %v713 = vld [vmem:[%s541 + $0x28] sm:$0xff]
        %v714 = vld [vmem:[%s541 + $0x30] sm:$0xff]
        %v715 = vld [vmem:[%s541 + $0x38] sm:$0xff]
        %v716 = vld [vmem:[%s541 + $0x40] sm:$0xff]
        %v717 = vld [vmem:[%s541 + $0x48] sm:$0xff]
        %v718 = vld [vmem:[%s541 + $0x50] sm:$0xff]
        %v719 = vld [vmem:[%s541 + $0x58] sm:$0xff]
        %v720 = vld [vmem:[%s541 + $0x60] sm:$0xff]
        %v721 = vld [vmem:[%s541 + $0x68] sm:$0xff]
        %v722 = vld [vmem:[%s541 + $0x70] sm:$0xff]
        %v723 = vld [vmem:[%s541 + $0x78] sm:$0xff]
        %v724 = vld [vmem:[%s541 + $0x80] sm:$0xff]
        %v725 = vld [vmem:[%s541 + $0x88] sm:$0xff]
        %v726 = vld [vmem:[%s541 + $0x90] sm:$0xff]
        %v727 = vld [vmem:[%s541 + $0x98] sm:$0xff]
        %v728 = vld [vmem:[%s541 + $0xa0] sm:$0xff]
        %v729 = vld [vmem:[%s541 + $0xa8] sm:$0xff]
        %v730 = vld [vmem:[%s541 + $0xb0] sm:$0xff]
        %v731 = vld [vmem:[%s541 + $0xb8] sm:$0xff]
        %v732 = vld [vmem:[%s541 + $0xc0] sm:$0xff]
        %v733 = vld [vmem:[%s541 + $0xc8] sm:$0xff]
        %v734 = vld [vmem:[%s541 + $0xd0] sm:$0xff]
        %v735 = vld [vmem:[%s541 + $0xd8] sm:$0xff]
        %v736 = vld [vmem:[%s541 + $0xe0] sm:$0xff]
        %v737 = vld [vmem:[%s541 + $0xe8] sm:$0xff]
        %v738 = vld [vmem:[%s541 + $0xf0] sm:$0xff]
        %v739 = vld [vmem:[%s541 + $0xf8] sm:$0xff]
        %v772 = vunpack.c.l.b16 %v708
        %v773 = vunpack.c.h.b16 %v708
        %v774 = vunpack.c.l.b16 %v709
        %v775 = vunpack.c.h.b16 %v709
        %v776 = vunpack.c.l.b16 %v710
        %v777 = vunpack.c.h.b16 %v710
        %v778 = vunpack.c.l.b16 %v711
        %v779 = vunpack.c.h.b16 %v711
        %v780 = vunpack.c.l.b16 %v712
        %v781 = vunpack.c.h.b16 %v712
        %v782 = vunpack.c.l.b16 %v713
        %v783 = vunpack.c.h.b16 %v713
        %v784 = vunpack.c.l.b16 %v714
        %v785 = vunpack.c.h.b16 %v714
        %v786 = vunpack.c.l.b16 %v715
        %v787 = vunpack.c.h.b16 %v715
        %v788 = vunpack.c.l.b16 %v716
        %v789 = vunpack.c.h.b16 %v716
        %v790 = vunpack.c.l.b16 %v717
        %v791 = vunpack.c.h.b16 %v717
        %v792 = vunpack.c.l.b16 %v718
        %v793 = vunpack.c.h.b16 %v718
        %v794 = vunpack.c.l.b16 %v719
        %v795 = vunpack.c.h.b16 %v719
        %v796 = vunpack.c.l.b16 %v720
        %v797 = vunpack.c.h.b16 %v720
        %v798 = vunpack.c.l.b16 %v721
        %v799 = vunpack.c.h.b16 %v721
        %v800 = vunpack.c.l.b16 %v722
        %v801 = vunpack.c.h.b16 %v722
        %v802 = vunpack.c.l.b16 %v723
        %v803 = vunpack.c.h.b16 %v723
        %v804 = vunpack.c.l.b16 %v724
        %v805 = vunpack.c.h.b16 %v724
        %v806 = vunpack.c.l.b16 %v725
        %v807 = vunpack.c.h.b16 %v725
        %v808 = vunpack.c.l.b16 %v726
        %v809 = vunpack.c.h.b16 %v726
        %v810 = vunpack.c.l.b16 %v727
        %v811 = vunpack.c.h.b16 %v727
        %v812 = vunpack.c.l.b16 %v728
        %v813 = vunpack.c.h.b16 %v728
        %v814 = vunpack.c.l.b16 %v729
        %v815 = vunpack.c.h.b16 %v729
        %v816 = vunpack.c.l.b16 %v730
        %v817 = vunpack.c.h.b16 %v730
        %v818 = vunpack.c.l.b16 %v731
        %v819 = vunpack.c.h.b16 %v731
        %v820 = vunpack.c.l.b16 %v732
        %v821 = vunpack.c.h.b16 %v732
        %v822 = vunpack.c.l.b16 %v733
        %v823 = vunpack.c.h.b16 %v733
        %v824 = vunpack.c.l.b16 %v734
        %v825 = vunpack.c.h.b16 %v734
        %v826 = vunpack.c.l.b16 %v735
        %v827 = vunpack.c.h.b16 %v735
        %v828 = vunpack.c.l.b16 %v736
        %v829 = vunpack.c.h.b16 %v736
        %v830 = vunpack.c.l.b16 %v737
        %v831 = vunpack.c.h.b16 %v737
        %v832 = vunpack.c.l.b16 %v738
        %v833 = vunpack.c.h.b16 %v738
        %v834 = vunpack.c.l.b16 %v739
        %v835 = vunpack.c.h.b16 %v739
        %v836 = vpack.c.b16 %v774, %v772
        %v837 = vpack.c.b16 %v775, %v773
        %v838 = vpack.c.b16 %v778, %v776
        %v839 = vpack.c.b16 %v779, %v777
        %v840 = vpack.c.b16 %v782, %v780
        %v841 = vpack.c.b16 %v783, %v781
        %v842 = vpack.c.b16 %v786, %v784
        %v843 = vpack.c.b16 %v787, %v785
        %v844 = vpack.c.b16 %v790, %v788
        %v845 = vpack.c.b16 %v791, %v789
        %v846 = vpack.c.b16 %v794, %v792
        %v847 = vpack.c.b16 %v795, %v793
        %v848 = vpack.c.b16 %v798, %v796
        %v849 = vpack.c.b16 %v799, %v797
        %v850 = vpack.c.b16 %v802, %v800
        %v851 = vpack.c.b16 %v803, %v801
        %v852 = vpack.c.b16 %v806, %v804
        %v853 = vpack.c.b16 %v807, %v805
        %v854 = vpack.c.b16 %v810, %v808
        %v855 = vpack.c.b16 %v811, %v809
        %v856 = vpack.c.b16 %v814, %v812
        %v857 = vpack.c.b16 %v815, %v813
        %v858 = vpack.c.b16 %v818, %v816
        %v859 = vpack.c.b16 %v819, %v817
        %v860 = vpack.c.b16 %v822, %v820
        %v861 = vpack.c.b16 %v823, %v821
        %v862 = vpack.c.b16 %v826, %v824
        %v863 = vpack.c.b16 %v827, %v825
        %v864 = vpack.c.b16 %v830, %v828
        %v865 = vpack.c.b16 %v831, %v829
        %v866 = vpack.c.b16 %v834, %v832
        %v867 = vpack.c.b16 %v835, %v833
        %900 = vmatprep.subr.bf16.mxu0 %v837
        %901 = vmatpush1.bf16.msra.mxu0 %v836
        %902 = vmatprep.subr.bf16.mxu0 %v839
        %903 = vmatpush1.bf16.msra.mxu0 %v838
        %904 = vmatprep.subr.bf16.mxu0 %v841
        %905 = vmatpush1.bf16.msra.mxu0 %v840
        %906 = vmatprep.subr.bf16.mxu0 %v843
        %907 = vmatpush1.bf16.msra.mxu0 %v842
        %908 = vmatprep.subr.bf16.mxu0 %v845
        %909 = vmatpush1.bf16.msra.mxu0 %v844
        %910 = vmatprep.subr.bf16.mxu0 %v847
        %911 = vmatpush1.bf16.msra.mxu0 %v846
        %912 = vmatprep.subr.bf16.mxu0 %v849
        %913 = vmatpush1.bf16.msra.mxu0 %v848
        %914 = vmatprep.subr.bf16.mxu0 %v851
        %915 = vmatpush1.bf16.msra.mxu0 %v850
        %916 = vmatprep.subr.bf16.mxu0 %v853
        %917 = vmatpush1.bf16.msra.mxu0 %v852
        %918 = vmatprep.subr.bf16.mxu0 %v855
        %919 = vmatpush1.bf16.msra.mxu0 %v854
        %920 = vmatprep.subr.bf16.mxu0 %v857
        %921 = vmatpush1.bf16.msra.mxu0 %v856
        %922 = vmatprep.subr.bf16.mxu0 %v859
        %923 = vmatpush1.bf16.msra.mxu0 %v858
        %924 = vmatprep.subr.bf16.mxu0 %v861
        %925 = vmatpush1.bf16.msra.mxu0 %v860
        %926 = vmatprep.subr.bf16.mxu0 %v863
        %927 = vmatpush1.bf16.msra.mxu0 %v862
        %928 = vmatprep.subr.bf16.mxu0 %v865
        %929 = vmatpush1.bf16.msra.mxu0 %v864
        %930 = vmatprep.subr.bf16.mxu0 %v867
        %931 = vmatpush1.bf16.msra.mxu0 %v866
        %932 = vmatprep.mubr.bf16.mxu0 %v690
        %933 = vmatmul.mubr.bf16.gmra.mrb[0].mxu0 %v689
        %v934 = vpop.f32.mrb[0].mxu0
        %v935 = vadd.f32 0.0, %v934
        %v936 = vpop.f32.mrb[0].mxu0
        %v937 = vadd.f32 0.0, %v936
        %v938 = vpop.f32.mrb[0].mxu0
        %v939 = vadd.f32 0.0, %v938
        %v940 = vpop.f32.mrb[0].mxu0
        %v941 = vadd.f32 0.0, %v940
        %942 = vdwg.mxu0
        %v944 = vlaneseq
        %v945 = vshrl.u32 %v944, 7
        %v946 = vsub.s32 0, %v945
        %v947 = vrot.slane %v672, %v946
        %v948 = vlaneseq
        %v949 = vshrl.u32 %v948, 7
        %v950 = vsub.s32 1, %v949
        %v951 = vrot.slane %v672, %v950
        %v954 = vmul.f32 %v935, %v947
        %v955 = vmul.f32 %v937, %v951
        %v956 = vmul.f32 %v939, %v947
        %v957 = vmul.f32 %v941, %v951
        %v958 = vld [vmem:[%s550] sm:$0xff]
        %v959 = vld [vmem:[%s550 + $0x8] sm:$0xff]
        %v960 = vld [vmem:[%s550 + $0x10] sm:$0xff]
        %v961 = vld [vmem:[%s550 + $0x18] sm:$0xff]
        %v962 = vld [vmem:[%s550 + $0x20] sm:$0xff]
        %v963 = vld [vmem:[%s550 + $0x28] sm:$0xff]
        %v964 = vld [vmem:[%s550 + $0x30] sm:$0xff]
        %v965 = vld [vmem:[%s550 + $0x38] sm:$0xff]
        %v966 = vld [vmem:[%s550 + $0x40] sm:$0xff]
        %v967 = vld [vmem:[%s550 + $0x48] sm:$0xff]
        %v968 = vld [vmem:[%s550 + $0x50] sm:$0xff]
        %v969 = vld [vmem:[%s550 + $0x58] sm:$0xff]
        %v970 = vld [vmem:[%s550 + $0x60] sm:$0xff]
        %v971 = vld [vmem:[%s550 + $0x68] sm:$0xff]
        %v972 = vld [vmem:[%s550 + $0x70] sm:$0xff]
        %v973 = vld [vmem:[%s550 + $0x78] sm:$0xff]
        %v974 = vld [vmem:[%s550 + $0x80] sm:$0xff]
        %v975 = vld [vmem:[%s550 + $0x88] sm:$0xff]
        %v976 = vld [vmem:[%s550 + $0x90] sm:$0xff]
        %v977 = vld [vmem:[%s550 + $0x98] sm:$0xff]
        %v978 = vld [vmem:[%s550 + $0xa0] sm:$0xff]
        %v979 = vld [vmem:[%s550 + $0xa8] sm:$0xff]
        %v980 = vld [vmem:[%s550 + $0xb0] sm:$0xff]
        %v981 = vld [vmem:[%s550 + $0xb8] sm:$0xff]
        %v982 = vld [vmem:[%s550 + $0xc0] sm:$0xff]
        %v983 = vld [vmem:[%s550 + $0xc8] sm:$0xff]
        %v984 = vld [vmem:[%s550 + $0xd0] sm:$0xff]
        %v985 = vld [vmem:[%s550 + $0xd8] sm:$0xff]
        %v986 = vld [vmem:[%s550 + $0xe0] sm:$0xff]
        %v987 = vld [vmem:[%s550 + $0xe8] sm:$0xff]
        %v988 = vld [vmem:[%s550 + $0xf0] sm:$0xff]
        %v989 = vld [vmem:[%s550 + $0xf8] sm:$0xff]
        %v1022 = vunpack.c.l.b16 %v958
        %v1023 = vunpack.c.h.b16 %v958
        %v1024 = vunpack.c.l.b16 %v959
        %v1025 = vunpack.c.h.b16 %v959
        %v1026 = vunpack.c.l.b16 %v960
        %v1027 = vunpack.c.h.b16 %v960
        %v1028 = vunpack.c.l.b16 %v961
        %v1029 = vunpack.c.h.b16 %v961
        %v1030 = vunpack.c.l.b16 %v962
        %v1031 = vunpack.c.h.b16 %v962
        %v1032 = vunpack.c.l.b16 %v963
        %v1033 = vunpack.c.h.b16 %v963
        %v1034 = vunpack.c.l.b16 %v964
        %v1035 = vunpack.c.h.b16 %v964
        %v1036 = vunpack.c.l.b16 %v965
        %v1037 = vunpack.c.h.b16 %v965
        %v1038 = vunpack.c.l.b16 %v966
        %v1039 = vunpack.c.h.b16 %v966
        %v1040 = vunpack.c.l.b16 %v967
        %v1041 = vunpack.c.h.b16 %v967
        %v1042 = vunpack.c.l.b16 %v968
        %v1043 = vunpack.c.h.b16 %v968
        %v1044 = vunpack.c.l.b16 %v969
        %v1045 = vunpack.c.h.b16 %v969
        %v1046 = vunpack.c.l.b16 %v970
        %v1047 = vunpack.c.h.b16 %v970
        %v1048 = vunpack.c.l.b16 %v971
        %v1049 = vunpack.c.h.b16 %v971
        %v1050 = vunpack.c.l.b16 %v972
        %v1051 = vunpack.c.h.b16 %v972
        %v1052 = vunpack.c.l.b16 %v973
        %v1053 = vunpack.c.h.b16 %v973
        %v1054 = vunpack.c.l.b16 %v974
        %v1055 = vunpack.c.h.b16 %v974
        %v1056 = vunpack.c.l.b16 %v975
        %v1057 = vunpack.c.h.b16 %v975
        %v1058 = vunpack.c.l.b16 %v976
        %v1059 = vunpack.c.h.b16 %v976
        %v1060 = vunpack.c.l.b16 %v977
        %v1061 = vunpack.c.h.b16 %v977
        %v1062 = vunpack.c.l.b16 %v978
        %v1063 = vunpack.c.h.b16 %v978
        %v1064 = vunpack.c.l.b16 %v979
        %v1065 = vunpack.c.h.b16 %v979
        %v1066 = vunpack.c.l.b16 %v980
        %v1067 = vunpack.c.h.b16 %v980
        %v1068 = vunpack.c.l.b16 %v981
        %v1069 = vunpack.c.h.b16 %v981
        %v1070 = vunpack.c.l.b16 %v982
        %v1071 = vunpack.c.h.b16 %v982
        %v1072 = vunpack.c.l.b16 %v983
        %v1073 = vunpack.c.h.b16 %v983
        %v1074 = vunpack.c.l.b16 %v984
        %v1075 = vunpack.c.h.b16 %v984
        %v1076 = vunpack.c.l.b16 %v985
        %v1077 = vunpack.c.h.b16 %v985
        %v1078 = vunpack.c.l.b16 %v986
        %v1079 = vunpack.c.h.b16 %v986
        %v1080 = vunpack.c.l.b16 %v987
        %v1081 = vunpack.c.h.b16 %v987
        %v1082 = vunpack.c.l.b16 %v988
        %v1083 = vunpack.c.h.b16 %v988
        %v1084 = vunpack.c.l.b16 %v989
        %v1085 = vunpack.c.h.b16 %v989
        %v1086 = vpack.c.b16 %v1024, %v1022
        %v1087 = vpack.c.b16 %v1025, %v1023
        %v1088 = vpack.c.b16 %v1028, %v1026
        %v1089 = vpack.c.b16 %v1029, %v1027
        %v1090 = vpack.c.b16 %v1032, %v1030
        %v1091 = vpack.c.b16 %v1033, %v1031
        %v1092 = vpack.c.b16 %v1036, %v1034
        %v1093 = vpack.c.b16 %v1037, %v1035
        %v1094 = vpack.c.b16 %v1040, %v1038
        %v1095 = vpack.c.b16 %v1041, %v1039
        %v1096 = vpack.c.b16 %v1044, %v1042
        %v1097 = vpack.c.b16 %v1045, %v1043
        %v1098 = vpack.c.b16 %v1048, %v1046
        %v1099 = vpack.c.b16 %v1049, %v1047
        %v1100 = vpack.c.b16 %v1052, %v1050
        %v1101 = vpack.c.b16 %v1053, %v1051
        %v1102 = vpack.c.b16 %v1056, %v1054
        %v1103 = vpack.c.b16 %v1057, %v1055
        %v1104 = vpack.c.b16 %v1060, %v1058
        %v1105 = vpack.c.b16 %v1061, %v1059
        %v1106 = vpack.c.b16 %v1064, %v1062
        %v1107 = vpack.c.b16 %v1065, %v1063
        %v1108 = vpack.c.b16 %v1068, %v1066
        %v1109 = vpack.c.b16 %v1069, %v1067
        %v1110 = vpack.c.b16 %v1072, %v1070
        %v1111 = vpack.c.b16 %v1073, %v1071
        %v1112 = vpack.c.b16 %v1076, %v1074
        %v1113 = vpack.c.b16 %v1077, %v1075
        %v1114 = vpack.c.b16 %v1080, %v1078
        %v1115 = vpack.c.b16 %v1081, %v1079
        %v1116 = vpack.c.b16 %v1084, %v1082
        %v1117 = vpack.c.b16 %v1085, %v1083
        %1150 = vmatprep.subr.bf16.mxu0 %v1087
        %1151 = vmatpush1.bf16.msra.mxu0 %v1086
        %1152 = vmatprep.subr.bf16.mxu0 %v1089
        %1153 = vmatpush1.bf16.msra.mxu0 %v1088
        %1154 = vmatprep.subr.bf16.mxu0 %v1091
        %1155 = vmatpush1.bf16.msra.mxu0 %v1090
        %1156 = vmatprep.subr.bf16.mxu0 %v1093
        %1157 = vmatpush1.bf16.msra.mxu0 %v1092
        %1158 = vmatprep.subr.bf16.mxu0 %v1095
        %1159 = vmatpush1.bf16.msra.mxu0 %v1094
        %1160 = vmatprep.subr.bf16.mxu0 %v1097
        %1161 = vmatpush1.bf16.msra.mxu0 %v1096
        %1162 = vmatprep.subr.bf16.mxu0 %v1099
        %1163 = vmatpush1.bf16.msra.mxu0 %v1098
        %1164 = vmatprep.subr.bf16.mxu0 %v1101
        %1165 = vmatpush1.bf16.msra.mxu0 %v1100
        %1166 = vmatprep.subr.bf16.mxu0 %v1103
        %1167 = vmatpush1.bf16.msra.mxu0 %v1102
        %1168 = vmatprep.subr.bf16.mxu0 %v1105
        %1169 = vmatpush1.bf16.msra.mxu0 %v1104
        %1170 = vmatprep.subr.bf16.mxu0 %v1107
        %1171 = vmatpush1.bf16.msra.mxu0 %v1106
        %1172 = vmatprep.subr.bf16.mxu0 %v1109
        %1173 = vmatpush1.bf16.msra.mxu0 %v1108
        %1174 = vmatprep.subr.bf16.mxu0 %v1111
        %1175 = vmatpush1.bf16.msra.mxu0 %v1110
        %1176 = vmatprep.subr.bf16.mxu0 %v1113
        %1177 = vmatpush1.bf16.msra.mxu0 %v1112
        %1178 = vmatprep.subr.bf16.mxu0 %v1115
        %1179 = vmatpush1.bf16.msra.mxu0 %v1114
        %1180 = vmatprep.subr.bf16.mxu0 %v1117
        %1181 = vmatpush1.bf16.msra.mxu0 %v1116
        %1182 = vmatprep.mubr.bf16.mxu0 %v707
        %1183 = vmatmul.mubr.bf16.gmra.mrb[0].mxu0 %v706
        %v1184 = vpop.f32.mrb[0].mxu0
        %v1185 = vadd.f32 0.0, %v1184
        %v1186 = vpop.f32.mrb[0].mxu0
        %v1187 = vadd.f32 0.0, %v1186
        %v1188 = vpop.f32.mrb[0].mxu0
        %v1189 = vadd.f32 0.0, %v1188
        %v1190 = vpop.f32.mrb[0].mxu0
        %v1191 = vadd.f32 0.0, %v1190
        %1192 = vdwg.mxu0
        %v1193 = vxor.u32 %v954, 2147483648
        %v1194 = vxor.u32 %v955, 2147483648
        %v1195 = vxor.u32 %v956, 2147483648
        %v1196 = vxor.u32 %v957, 2147483648
        %v1197 = vmul.f32 %v1193, 1.442695
        %v1198 = vpow.pop %v1197
        %v1199 = vmul.f32 %v1194, 1.442695
        %v1200 = vpow.pop %v1199
        %v1201 = vmul.f32 %v1195, 1.442695
        %v1202 = vpow.pop %v1201
        %v1203 = vmul.f32 %v1196, 1.442695
        %v1204 = vpow.pop %v1203
        %v1205 = vadd.f32 %v1198, 1.0
        %v1206 = vadd.f32 %v1200, 1.0
        %v1207 = vadd.f32 %v1202, 1.0
        %v1208 = vadd.f32 %v1204, 1.0
        %v1209 = vrcp.pop %v1205
        %v1210 = vmul.f32 1.0, %v1209
        %v1211 = vrcp.pop %v1206
        %v1212 = vmul.f32 1.0, %v1211
        %v1213 = vrcp.pop %v1207
        %v1214 = vmul.f32 1.0, %v1213
        %v1215 = vrcp.pop %v1208
        %v1216 = vmul.f32 1.0, %v1215
        %v1217 = vmul.f32 %v954, %v1210
        %v1218 = vmul.f32 %v955, %v1212
        %v1219 = vmul.f32 %v956, %v1214
        %v1220 = vmul.f32 %v957, %v1216
        %v1222 = vlaneseq
        %v1223 = vshrl.u32 %v1222, 7
        %v1224 = vsub.s32 0, %v1223
        %v1225 = vrot.slane %v673, %v1224
        %v1226 = vlaneseq
        %v1227 = vshrl.u32 %v1226, 7
        %v1228 = vsub.s32 1, %v1227
        %v1229 = vrot.slane %v673, %v1228
        %v1232 = vmul.f32 %v1185, %v1225
        %v1233 = vmul.f32 %v1187, %v1229
        %v1234 = vmul.f32 %v1189, %v1225
        %v1235 = vmul.f32 %v1191, %v1229
        %v1236 = vmul.f32 %v1217, %v1232
        %v1237 = vmul.f32 %v1218, %v1233
        %v1238 = vmul.f32 %v1219, %v1234
        %v1239 = vmul.f32 %v1220, %v1235
        %v1240 = vld [vmem:[#allocation2] sm:$0xff]
        %v1241 = vld [vmem:[#allocation2 + $0x8] sm:$0xff]
        %v1242 = vld [vmem:[#allocation2 + $0x10] sm:$0xff]
        %v1243 = vld [vmem:[#allocation2 + $0x18] sm:$0xff]
        %v1244 = vpack.c.bf16 %v1238, %v1236
        %v1245 = vpack.c.bf16 %v1239, %v1237
        %v1246 = vld [vmem:[%s559] sm:$0xff]
        %v1247 = vld [vmem:[%s559 + $0x8] sm:$0xff]
        %v1248 = vld [vmem:[%s559 + $0x10] sm:$0xff]
        %v1249 = vld [vmem:[%s559 + $0x18] sm:$0xff]
        %v1250 = vld [vmem:[%s559 + $0x20] sm:$0xff]
        %v1251 = vld [vmem:[%s559 + $0x28] sm:$0xff]
        %v1252 = vld [vmem:[%s559 + $0x30] sm:$0xff]
        %v1253 = vld [vmem:[%s559 + $0x38] sm:$0xff]
        %v1254 = vld [vmem:[%s559 + $0x40] sm:$0xff]
        %v1255 = vld [vmem:[%s559 + $0x48] sm:$0xff]
        %v1256 = vld [vmem:[%s559 + $0x50] sm:$0xff]
        %v1257 = vld [vmem:[%s559 + $0x58] sm:$0xff]
        %v1258 = vld [vmem:[%s559 + $0x60] sm:$0xff]
        %v1259 = vld [vmem:[%s559 + $0x68] sm:$0xff]
        %v1260 = vld [vmem:[%s559 + $0x70] sm:$0xff]
        %v1261 = vld [vmem:[%s559 + $0x78] sm:$0xff]
        %v1262 = vld [vmem:[%s559 + $0x80] sm:$0xff]
        %v1263 = vld [vmem:[%s559 + $0x88] sm:$0xff]
        %v1264 = vld [vmem:[%s559 + $0x90] sm:$0xff]
        %v1265 = vld [vmem:[%s559 + $0x98] sm:$0xff]
        %v1266 = vld [vmem:[%s559 + $0xa0] sm:$0xff]
        %v1267 = vld [vmem:[%s559 + $0xa8] sm:$0xff]
        %v1268 = vld [vmem:[%s559 + $0xb0] sm:$0xff]
        %v1269 = vld [vmem:[%s559 + $0xb8] sm:$0xff]
        %v1270 = vld [vmem:[%s559 + $0xc0] sm:$0xff]
        %v1271 = vld [vmem:[%s559 + $0xc8] sm:$0xff]
        %v1272 = vld [vmem:[%s559 + $0xd0] sm:$0xff]
        %v1273 = vld [vmem:[%s559 + $0xd8] sm:$0xff]
        %v1274 = vld [vmem:[%s559 + $0xe0] sm:$0xff]
        %v1275 = vld [vmem:[%s559 + $0xe8] sm:$0xff]
        %v1276 = vld [vmem:[%s559 + $0xf0] sm:$0xff]
        %v1277 = vld [vmem:[%s559 + $0xf8] sm:$0xff]
        %v1310 = vunpack.c.l.b16 %v1246
        %v1311 = vunpack.c.h.b16 %v1246
        %v1312 = vunpack.c.l.b16 %v1247
        %v1313 = vunpack.c.h.b16 %v1247
        %v1314 = vunpack.c.l.b16 %v1248
        %v1315 = vunpack.c.h.b16 %v1248
        %v1316 = vunpack.c.l.b16 %v1249
        %v1317 = vunpack.c.h.b16 %v1249
        %v1318 = vunpack.c.l.b16 %v1250
        %v1319 = vunpack.c.h.b16 %v1250
        %v1320 = vunpack.c.l.b16 %v1251
        %v1321 = vunpack.c.h.b16 %v1251
        %v1322 = vunpack.c.l.b16 %v1252
        %v1323 = vunpack.c.h.b16 %v1252
        %v1324 = vunpack.c.l.b16 %v1253
        %v1325 = vunpack.c.h.b16 %v1253
        %v1326 = vunpack.c.l.b16 %v1254
        %v1327 = vunpack.c.h.b16 %v1254
        %v1328 = vunpack.c.l.b16 %v1255
        %v1329 = vunpack.c.h.b16 %v1255
        %v1330 = vunpack.c.l.b16 %v1256
        %v1331 = vunpack.c.h.b16 %v1256
        %v1332 = vunpack.c.l.b16 %v1257
        %v1333 = vunpack.c.h.b16 %v1257
        %v1334 = vunpack.c.l.b16 %v1258
        %v1335 = vunpack.c.h.b16 %v1258
        %v1336 = vunpack.c.l.b16 %v1259
        %v1337 = vunpack.c.h.b16 %v1259
        %v1338 = vunpack.c.l.b16 %v1260
        %v1339 = vunpack.c.h.b16 %v1260
        %v1340 = vunpack.c.l.b16 %v1261
        %v1341 = vunpack.c.h.b16 %v1261
        %v1342 = vunpack.c.l.b16 %v1262
        %v1343 = vunpack.c.h.b16 %v1262
        %v1344 = vunpack.c.l.b16 %v1263
        %v1345 = vunpack.c.h.b16 %v1263
        %v1346 = vunpack.c.l.b16 %v1264
        %v1347 = vunpack.c.h.b16 %v1264
        %v1348 = vunpack.c.l.b16 %v1265
        %v1349 = vunpack.c.h.b16 %v1265
        %v1350 = vunpack.c.l.b16 %v1266
        %v1351 = vunpack.c.h.b16 %v1266
        %v1352 = vunpack.c.l.b16 %v1267
        %v1353 = vunpack.c.h.b16 %v1267
        %v1354 = vunpack.c.l.b16 %v1268
        %v1355 = vunpack.c.h.b16 %v1268
        %v1356 = vunpack.c.l.b16 %v1269
        %v1357 = vunpack.c.h.b16 %v1269
        %v1358 = vunpack.c.l.b16 %v1270
        %v1359 = vunpack.c.h.b16 %v1270
        %v1360 = vunpack.c.l.b16 %v1271
        %v1361 = vunpack.c.h.b16 %v1271
        %v1362 = vunpack.c.l.b16 %v1272
        %v1363 = vunpack.c.h.b16 %v1272
        %v1364 = vunpack.c.l.b16 %v1273
        %v1365 = vunpack.c.h.b16 %v1273
        %v1366 = vunpack.c.l.b16 %v1274
        %v1367 = vunpack.c.h.b16 %v1274
        %v1368 = vunpack.c.l.b16 %v1275
        %v1369 = vunpack.c.h.b16 %v1275
        %v1370 = vunpack.c.l.b16 %v1276
        %v1371 = vunpack.c.h.b16 %v1276
        %v1372 = vunpack.c.l.b16 %v1277
        %v1373 = vunpack.c.h.b16 %v1277
        %v1374 = vpack.c.b16 %v1312, %v1310
        %v1375 = vpack.c.b16 %v1313, %v1311
        %v1376 = vpack.c.b16 %v1316, %v1314
        %v1377 = vpack.c.b16 %v1317, %v1315
        %v1378 = vpack.c.b16 %v1320, %v1318
        %v1379 = vpack.c.b16 %v1321, %v1319
        %v1380 = vpack.c.b16 %v1324, %v1322
        %v1381 = vpack.c.b16 %v1325, %v1323
        %v1382 = vpack.c.b16 %v1328, %v1326
        %v1383 = vpack.c.b16 %v1329, %v1327
        %v1384 = vpack.c.b16 %v1332, %v1330
        %v1385 = vpack.c.b16 %v1333, %v1331
        %v1386 = vpack.c.b16 %v1336, %v1334
        %v1387 = vpack.c.b16 %v1337, %v1335
        %v1388 = vpack.c.b16 %v1340, %v1338
        %v1389 = vpack.c.b16 %v1341, %v1339
        %v1390 = vpack.c.b16 %v1344, %v1342
        %v1391 = vpack.c.b16 %v1345, %v1343
        %v1392 = vpack.c.b16 %v1348, %v1346
        %v1393 = vpack.c.b16 %v1349, %v1347
        %v1394 = vpack.c.b16 %v1352, %v1350
        %v1395 = vpack.c.b16 %v1353, %v1351
        %v1396 = vpack.c.b16 %v1356, %v1354
        %v1397 = vpack.c.b16 %v1357, %v1355
        %v1398 = vpack.c.b16 %v1360, %v1358
        %v1399 = vpack.c.b16 %v1361, %v1359
        %v1400 = vpack.c.b16 %v1364, %v1362
        %v1401 = vpack.c.b16 %v1365, %v1363
        %v1402 = vpack.c.b16 %v1368, %v1366
        %v1403 = vpack.c.b16 %v1369, %v1367
        %v1404 = vpack.c.b16 %v1372, %v1370
        %v1405 = vpack.c.b16 %v1373, %v1371
        %1438 = vmatprep.subr.bf16.mxu0 %v1375
        %1439 = vmatpush1.bf16.msra.mxu0 %v1374
        %1440 = vmatprep.subr.bf16.mxu0 %v1377
        %1441 = vmatpush1.bf16.msra.mxu0 %v1376
        %1442 = vmatprep.subr.bf16.mxu0 %v1379
        %1443 = vmatpush1.bf16.msra.mxu0 %v1378
        %1444 = vmatprep.subr.bf16.mxu0 %v1381
        %1445 = vmatpush1.bf16.msra.mxu0 %v1380
        %1446 = vmatprep.subr.bf16.mxu0 %v1383
        %1447 = vmatpush1.bf16.msra.mxu0 %v1382
        %1448 = vmatprep.subr.bf16.mxu0 %v1385
        %1449 = vmatpush1.bf16.msra.mxu0 %v1384
        %1450 = vmatprep.subr.bf16.mxu0 %v1387
        %1451 = vmatpush1.bf16.msra.mxu0 %v1386
        %1452 = vmatprep.subr.bf16.mxu0 %v1389
        %1453 = vmatpush1.bf16.msra.mxu0 %v1388
        %1454 = vmatprep.subr.bf16.mxu0 %v1391
        %1455 = vmatpush1.bf16.msra.mxu0 %v1390
        %1456 = vmatprep.subr.bf16.mxu0 %v1393
        %1457 = vmatpush1.bf16.msra.mxu0 %v1392
        %1458 = vmatprep.subr.bf16.mxu0 %v1395
        %1459 = vmatpush1.bf16.msra.mxu0 %v1394
        %1460 = vmatprep.subr.bf16.mxu0 %v1397
        %1461 = vmatpush1.bf16.msra.mxu0 %v1396
        %1462 = vmatprep.subr.bf16.mxu0 %v1399
        %1463 = vmatpush1.bf16.msra.mxu0 %v1398
        %1464 = vmatprep.subr.bf16.mxu0 %v1401
        %1465 = vmatpush1.bf16.msra.mxu0 %v1400
        %1466 = vmatprep.subr.bf16.mxu0 %v1403
        %1467 = vmatpush1.bf16.msra.mxu0 %v1402
        %1468 = vmatprep.subr.bf16.mxu0 %v1405
        %1469 = vmatpush1.bf16.msra.mxu0 %v1404
        %1470 = vmatprep.mubr.bf16.mxu0 %v1245
        %1471 = vmatmul.mubr.bf16.gmra.mrb[0].mxu0 %v1244
        %v1472 = vpop.f32.mrb[0].mxu0
        %v1473 = vadd.f32 0.0, %v1472
        %v1474 = vpop.f32.mrb[0].mxu0
        %v1475 = vadd.f32 0.0, %v1474
        %v1476 = vpop.f32.mrb[0].mxu0
        %v1477 = vadd.f32 0.0, %v1476
        %v1478 = vpop.f32.mrb[0].mxu0
        %v1479 = vadd.f32 0.0, %v1478
        %1480 = vdwg.mxu0
        %v1481 = vadd.f32 %v1240, %v1473
        %v1482 = vadd.f32 %v1241, %v1475
        %v1483 = vadd.f32 %v1242, %v1477
        %v1484 = vadd.f32 %v1243, %v1479
        %1485 = vst [vmem:[#allocation2] sm:$0xff] %v1481
        %1486 = vst [vmem:[#allocation2 + $0x8] sm:$0xff] %v1482
        %1487 = vst [vmem:[#allocation2 + $0x10] sm:$0xff] %v1483
        %1488 = vst [vmem:[#allocation2 + $0x18] sm:$0xff] %v1484
        %p1489 = scmp.eq.s32.totalorder %s44, 3
        // Predicated region
        $region85: #{tpu_custom_call.1} parent=55 // pred_check
          %p1490 = pneg %p1489
        $region86: #{tpu_custom_call.1} parent=55 // pred_check_branch
          %1492 = sbr.rel (%p1490) target = $region88
        $region87: #{tpu_custom_call.1} parent=55 // pred_region
          %v1493 = vld [vmem:[%s656] sm:$0x3]
          %v1494 = vld [vmem:[#allocation2] sm:$0xff]
          %v1495 = vld [vmem:[#allocation2 + $0x8] sm:$0xff]
          %v1496 = vld [vmem:[#allocation2 + $0x10] sm:$0xff]
          %v1497 = vld [vmem:[#allocation2 + $0x18] sm:$0xff]
          %v1499 = vlaneseq
          %v1500 = vshrl.u32 %v1499, 7
          %v1501 = vsub.s32 0, %v1500
          %v1502 = vrot.slane %v1493, %v1501
          %v1503 = vlaneseq
          %v1504 = vshrl.u32 %v1503, 7
          %v1505 = vsub.s32 1, %v1504
          %v1506 = vrot.slane %v1493, %v1505
          %v1509 = vmul.f32 %v1494, %v1502
          %v1510 = vmul.f32 %v1495, %v1506
          %v1511 = vmul.f32 %v1496, %v1502
          %v1512 = vmul.f32 %v1497, %v1506
          %1513 = vst [vmem:[%s634] sm:$0xff] %v1509
          %1514 = vst [vmem:[%s634 + $0x8] sm:$0xff] %v1510
          %1515 = vst [vmem:[%s634 + $0x10] sm:$0xff] %v1511
          %1516 = vst [vmem:[%s634 + $0x18] sm:$0xff] %v1512
        $region88: #{tpu_custom_call.1} parent=55 // pred_fallthru
          _
        %s1517 = sand.u32 %s315, 1
        %s1518 = scalar_lea.sflag [#allocation5], %s1517
        %s1519 = sand.u32 %s315, 1
        %s1520 = smul.addr %s1519, 32
        %s1521 = scalar_lea.vmem [#allocation14], %s1520
        // Predicated region
        $region89: #{tpu_custom_call.1} parent=55 // pred_check
          %p1522 = pneg %p325
        $region90: #{tpu_custom_call.1} parent=55 // pred_check_branch
          %1524 = sbr.rel (%p1522) target = $region92
        $region91: #{tpu_custom_call.1} parent=55 // pred_region
          %s1525 = smul.u32 2, %s43
          %s1527 = ssub.s32 512, 512
          %1528 = vsyncadd %s1518, %s1527
          %s1529 = smul.addr %s1525, 2
          %s1530 = smul.addr %s41, 8
          %s1531 = sadd.s32 %s1529, %s1530
          %s1532 = smul.addr %s42, 16
          %s1533 = sadd.s32 %s1531, %s1532
          %s1534 = smul.addr %s1533, 128
          %s1535 = scalar_lea.hbm %s9, %s1534
          %s1536 = sshll.u32 %s1521, 4
          %s1537 = int_to_ptr.vmem [resolvable:$true] %s1536
          %1542 = dma.vmem_to_hbm [thread:$0]  %s1537, 512, %s1535, %s1518, 256, 256, 16
        $region92: #{tpu_custom_call.1} parent=55 // pred_fallthru
          _
      $region56: #{tpu_custom_call.1} parent=5 // pred_fallthru
        _
      %p1543 = scmp.le.s32.totalorder 2, %s30
      // Predicated region
      $region93: #{tpu_custom_call.1} parent=5 // pred_check
        %p1544 = pneg %p1543
      $region94: #{tpu_custom_call.1} parent=5 // pred_check_branch
        %1546 = sbr.rel (%p1544) target = $region96
      $region95: #{tpu_custom_call.1} parent=5 // pred_region
        %s1547 = ssub.s32 %s30, 2
        // Predicated region
        $region97: #{tpu_custom_call.1} parent=95 // pred_check
          %p1548 = pneg %p331
        $region98: #{tpu_custom_call.1} parent=95 // pred_check_branch
          %1550 = sbr.rel (%p1548) target = $region100
        $region99: #{tpu_custom_call.1} parent=95 // pred_region
          %s1551 = sand.u32 %s316, 1
          %s1552 = scalar_lea.sflag [#allocation5], %s1551
          %s1553 = sand.u32 %s316, 1
          %s1554 = smul.addr %s1553, 32
          %s1555 = scalar_lea.vmem [#allocation14], %s1554
          %1556 = dma.done %s1552, 512
        $region100: #{tpu_custom_call.1} parent=95 // pred_fallthru
          _
      $region96: #{tpu_custom_call.1} parent=5 // pred_fallthru
        _
    $region6: #{tpu_custom_call.1} parent=1 // loop_footer
      %s34 = sadd.s32 1, %s30
    $region7: #{tpu_custom_call.1} parent=1 // loop_footer_branch
      %29 = sbr.rel target = $region3
    $region8: #{tpu_custom_call.1} parent=1 // loop_exit
      _
    %1557 = vsyncpa [#allocation4], 1
    %s1558 = scalar_lea.sflag [#allocation4], 1
    %1559 = vsyncpa %s1558, 1
    %1560 = vsyncpa [#allocation7], 1
    %s1561 = scalar_lea.sflag [#allocation7], 1
    %1562 = vsyncpa %s1561, 1
    %1563 = vsyncpa [#allocation10], 1
    %s1564 = scalar_lea.sflag [#allocation10], 1
    %1565 = vsyncpa %s1564, 1
    %1566 = vsyncpa [#allocation13], 1
    %s1567 = scalar_lea.sflag [#allocation13], 1
    %1568 = vsyncpa %s1567, 1
    %1569 = vsyncpa [#allocation5], 1
    %s1570 = scalar_lea.sflag [#allocation5], 1
    %1571 = vsyncpa %s1570, 1

</llo_original>
